<compile_context>
chip_gen: v7x
topology: tpu7x:2x2x1
jax: 0.10.0
libtpu: 0.0.40
codegen_flags: <defaults>
</compile_context>

<pallas_src>
import jax
import jax.numpy as jnp
import numpy as np
from jax.experimental import pallas as pl
from jax.experimental.pallas import tpu as pltpu

EPS = 1e-5           # nn.BatchNorm3d default
NEG_SLOPE = 0.01     # nn.LeakyReLU default

# Problem configuration (small, consistent with the module).
N, C, S, K = 2, 4, 8, 3
S1 = S - (K - 1)             # 6  (after conv1)
S2 = S1 - (K - 1)            # 4  (after conv2)
ROWS = N * S                 # 16 rows  = (n, d)
LIN = C * S * S              # 256 lanes = (ci, h, w)
LMID = C * S1 * S1           # 144 lanes = (c, h1, w1)
LOUT_VALID = C * S2 * S2     # 64 valid output lanes = (co, h2, w2)
LOUT = 128                   # padded to a full lane tile -> unmasked stores
CNT1 = float(N * S1 * S1 * S1)   # BN1 per-channel element count (432)
CNT2 = float(N * S2 * S2 * S2)   # BN2 per-channel element count (128)


def _leaky(v):
    return jnp.where(v >= 0, v, NEG_SLOPE * v)


# ----------------------------------- kernel -----------------------------------

def _split_bf16(a):
    """f32 -> [hi; lo] bf16 rows stacked along axis 0 (bf16x2 decomposition).
    hi is the bf16 rounding of a; lo = a - hi is exact in f32 and tiny, so the
    pair reproduces a to ~2^-17 relative accuracy through bf16 matmuls."""
    hi = a.astype(jnp.bfloat16)
    lo = (a - hi.astype(jnp.float32)).astype(jnp.bfloat16)
    return jnp.concatenate([hi, lo], axis=0)


def _acc_dot(a_f32, b_bf16, rows):
    """Accurate matmul of a non-bf16-exact f32 lhs against a bf16-exact rhs as a
    single bf16 MXU matmul on the stacked [hi; lo] halves (then summed)."""
    p = jnp.dot(_split_bf16(a_f32), b_bf16, preferred_element_type=jnp.float32)
    return p[:rows, :] + p[rows:, :]


def resblock_kernel(x_ref, wb1_ref, wb2_ref, wsk_ref,
                    sel1_ref, selT1_ref, sel2_ref, selT2_ref, chp_ref, out_ref):
    f32 = jnp.float32

    # Row validity masks (rows are (n, d); d = row % S).
    row_d = jax.lax.broadcasted_iota(jnp.int32, (ROWS, 1), 0) % S
    rmask1 = (row_d < S1).astype(f32)            # rows valid after conv1
    rmask2 = (row_d < S2).astype(f32)            # rows valid after conv2

    xc = x_ref[...]                              # (16, 768) bf16: [x, shift1(x), shift2(x)]

    # ---- conv1: all 3 kd taps fused into ONE MXU matmul (input pre-shifted host-side) ----
    h1 = jnp.dot(xc, wb1_ref[...], preferred_element_type=f32)          # (16, 144)

    # ---- skip: depth crop = the kd=2-shifted lane block; h/w crop folded into the band ----
    y = jnp.dot(xc[:, 2 * LIN:], wsk_ref[...], preferred_element_type=f32)   # (16, 128)

    def bn_scale_shift(h, rmask, sel_ref, selT_ref, g_row, b_row, inv_cnt):
        # Training-mode BN in one pass: masked sum / sum-of-squares, then one MXU dot
        # against the one-hot channel selector for the per-channel reduction and one
        # MXU dot against its transpose for the channel->lane broadcast.
        hm = h * rmask
        s1 = jnp.sum(hm, axis=0, keepdims=True)                         # (1, L)
        s2 = jnp.sum(hm * hm, axis=0, keepdims=True)                    # (1, L)
        stats = jnp.concatenate([s1, s2], axis=0)                       # (2, L)
        ch = _acc_dot(stats, sel_ref[...], 2) * inv_cnt                 # (2, 128)
        mean = ch[0:1, :]
        var = ch[1:2, :] - mean * mean
        sc = g_row * jax.lax.rsqrt(var + EPS)                           # (1, 128)
        sh = b_row - mean * sc                                          # (1, 128)
        ss = _acc_dot(jnp.concatenate([sc, sh], axis=0), selT_ref[...], 2)   # (2, L)
        return ss[0:1, :], ss[1:2, :]

    # ---- BN1 affine + LeakyReLU fused ----
    sc1, sh1 = bn_scale_shift(h1, rmask1, sel1_ref, selT1_ref,
                              chp_ref[0:1, :], chp_ref[1:2, :], 1.0 / CNT1)
    h1 = _leaky(h1 * sc1 + sh1)                                         # (16, 144)

    # ---- conv2: 3 MXU matmuls (bf16x2 split lhs) + XLU row shifts of the outputs ----
    h1s = _split_bf16(h1)                                               # (32, 144) bf16

    def conv2_tap(kd):
        p = jnp.dot(h1s, wb2_ref[kd], preferred_element_type=f32)       # (32, 128)
        return p[:ROWS, :] + p[ROWS:, :]

    h2 = conv2_tap(0)
    h2 = h2 + pltpu.roll(conv2_tap(1), ROWS - 1, axis=0)   # shift rows up by 1
    h2 = h2 + pltpu.roll(conv2_tap(2), ROWS - 2, axis=0)   # shift rows up by 2
    # (rolled-in garbage only lands in rows with d >= S2, which BN2 masks and the
    #  wrapper crops, so no explicit zero-mask is needed.)

    # ---- BN2 (skip bias folded into its shift row) + residual + final LeakyReLU ----
    sc2, sh2 = bn_scale_shift(h2, rmask2, sel2_ref, selT2_ref,
                              chp_ref[2:3, :], chp_ref[3:4, :], 1.0 / CNT2)
    out_ref[...] = _leaky(h2 * sc2 + sh2 + y)                           # one (16,128) store


# --------------------- one-time, host-side parameter transforms ---------------------

def _band_matrix(w, hi, wi, ho, wo):
    """PyTorch conv weight (Cout, Cin, K, K, K) -> (K, Cin*hi*wi, Cout*ho*wo) banded
    matrices B with B[kd, ci*hi*wi + h*wi + w_, co*ho*wo + y*wo + z] =
    w[co, ci, kd, h-y, w_-z] when 0 <= h-y < K and 0 <= w_-z < K, else 0."""
    w = np.asarray(w, np.float32)
    cout, cin, k = w.shape[0], w.shape[1], w.shape[2]
    dh = np.arange(hi)[:, None] - np.arange(ho)[None, :]
    dw = np.arange(wi)[:, None] - np.arange(wo)[None, :]
    mask = (((dh >= 0) & (dh < k))[:, :, None, None]
            & ((dw >= 0) & (dw < k))[None, None, :, :]).astype(np.float32)
    ih = np.clip(dh, 0, k - 1)
    iw = np.clip(dw, 0, k - 1)
    wt = np.transpose(w, (2, 0, 1, 3, 4))                              # (kd, co, ci, kh, kw)
    a = wt[:, :, :, ih[:, :, None, None], iw[None, None, :, :]]        # (kd, co, ci, h, y, w_, z)
    a = a * mask
    a = np.transpose(a, (0, 2, 3, 5, 1, 4, 6))                         # (kd, ci, h, w_, co, y, z)
    return np.ascontiguousarray(a.reshape(k, cin * hi * wi, cout * ho * wo))


def _skip_matrix(wsk, s_in, s_out, crop):
    """1x1x1 skip conv + symmetric (h, w) crop -> (Cin*s_in*s_in, Cout*s_out*s_out)."""
    wsk = np.asarray(wsk, np.float32)
    cout, cin = wsk.shape[0], wsk.shape[1]
    w2 = wsk.reshape(cout, cin)
    e = np.zeros((s_in, s_out), np.float32)
    e[np.arange(s_out) + crop, np.arange(s_out)] = 1.0
    t = np.einsum('oc,hy,wz->chwoyz', w2, e, e)                        # (ci, h, w, co, h2, w2)
    return np.ascontiguousarray(t.reshape(cin * s_in * s_in, cout * s_out * s_out))


def _channel_selector(lanes, per_chan):
    """One-hot (lanes, 128) matrix mapping lane -> channel column (0/1 values)."""
    sel = np.zeros((lanes, LOUT), np.float32)
    idx = np.arange(C * per_chan)
    sel[idx, idx // per_chan] = 1.0
    return sel


def prepare_params(p):
    """One-time transform of PyTorch-layout parameters into the packed, bf16,
    MXU-friendly operands the kernel consumes.  Run once, outside the per-call jit."""
    wb1 = _band_matrix(p['w1'], S, S, S1, S1)                          # (3, 256, 144)
    wb1s = jnp.asarray(wb1.reshape(K * LIN, LMID), jnp.bfloat16)       # taps stacked on K axis
    wb2 = _band_matrix(p['w2'], S1, S1, S2, S2)                        # (3, 144, 64)
    wb2 = jnp.asarray(np.pad(wb2, ((0, 0), (0, 0), (0, LOUT - LOUT_VALID))), jnp.bfloat16)
    wskm = _skip_matrix(p['wsk'], S, S2, (S - S2) // 2)                # (256, 64)
    wskm = jnp.asarray(np.pad(wskm, ((0, 0), (0, LOUT - LOUT_VALID))), jnp.bfloat16)

    sel1 = _channel_selector(LMID, S1 * S1)                            # (144, 128)
    sel2 = _channel_selector(LOUT, S2 * S2)                            # (128, 128)
    selT1 = np.ascontiguousarray(sel1.T)                               # (128, 144)
    selT2 = np.ascontiguousarray(sel2.T)                               # (128, 128)

    # Per-channel scalar rows, channel value at lane c: gamma1, beta1, gamma2, beta2+bsk.
    chp = np.zeros((4, LOUT), np.float32)
    chp[0, :C] = np.asarray(p['g1'], np.float32)
    chp[1, :C] = np.asarray(p['be1'], np.float32)
    chp[2, :C] = np.asarray(p['g2'], np.float32)
    chp[3, :C] = np.asarray(p['be2'], np.float32) + np.asarray(p['bsk'], np.float32)

    b16 = lambda a: jnp.asarray(a, jnp.bfloat16)
    return (wb1s, wb2, wskm, b16(sel1), b16(selT1), b16(sel2), b16(selT2),
            jnp.asarray(chp, jnp.float32))


@jax.jit
def resblock_forward(x_ncdhw, prep):
    wb1s, wb2, wskm, sel1, selT1, sel2, selT2, chp = prep

    # NCDHW -> rows=(n, d), lanes=(ci, h, w); build the 3 kd-shifted copies along lanes so
    # conv1's depth taps fuse into one matmul and the skip reuses the kd=2-shifted block.
    x2 = jnp.transpose(x_ncdhw.astype(jnp.float32), (0, 2, 1, 3, 4)).reshape(ROWS, LIN)
    xs1 = jnp.concatenate([x2[1:], jnp.zeros((1, LIN), jnp.float32)], axis=0)
    xs2 = jnp.concatenate([x2[2:], jnp.zeros((2, LIN), jnp.float32)], axis=0)
    x_cat = jnp.concatenate([x2, xs1, xs2], axis=1).astype(jnp.bfloat16)   # (16, 768)

    vmem = pl.BlockSpec(memory_space=pltpu.MemorySpace.VMEM)
    out = pl.pallas_call(
        resblock_kernel,
        out_shape=jax.ShapeDtypeStruct((ROWS, LOUT), jnp.float32),
        in_specs=[vmem] * 9,
        out_specs=vmem,
    )(x_cat, wb1s, wb2, wskm, sel1, selT1, sel2, selT2, chp)

    o = out.reshape(N, S, LOUT)[:, :S2, :LOUT_VALID]                   # (n, d2, co*16+h2*4+w2)
    o = o.reshape(N, S2, C, S2, S2)                                    # (n, d2, co, h2, w2)
    return jnp.transpose(o, (0, 2, 1, 3, 4))                           # back to NCDHW


# ----------------------------------- reference -----------------------------------

def resblock_reference(x_ncdhw, p):
    x = jnp.transpose(x_ncdhw.astype(jnp.float32), (0, 2, 3, 4, 1))    # NDHWC

    def conv(inp, w, b):
        wio = jnp.transpose(w, (2, 3, 4, 1, 0))                        # DHWIO
        return jax.lax.conv_general_dilated(
            inp, wio, (1, 1, 1), 'VALID',
            dimension_numbers=('NDHWC', 'DHWIO', 'NDHWC')) + b

    def bn(h, g, b):
        mean = jnp.mean(h, axis=(0, 1, 2, 3), keepdims=True)
        var = jnp.mean((h - mean) ** 2, axis=(0, 1, 2, 3), keepdims=True)
        return (h - mean) * jax.lax.rsqrt(var + EPS) * g + b

    h = conv(x, p['w1'], p['b1'])
    h = _leaky(bn(h, p['g1'], p['be1']))
    h = conv(h, p['w2'], p['b2'])
    h = bn(h, p['g2'], p['be2'])

    y = jnp.einsum('ndhwc,oc->ndhwo', x, p['wsk'].reshape(C, C)) + p['bsk']
    c0 = (y.shape[1] - h.shape[1]) // 2
    y = y[:, c0:c0 + h.shape[1], c0:c0 + h.shape[2], c0:c0 + h.shape[3], :]
    o = _leaky(h + y)
    return jnp.transpose(o, (0, 4, 1, 2, 3))


if __name__ == "__main__":
    key = jax.random.PRNGKey(0)
    ks = jax.random.split(key, 12)

    def bf16_exact(a):
        # Round to bf16-representable values so bf16 MXU matmuls are product-exact
        # and the kernel/reference comparison is insensitive to matmul precision mode.
        return a.astype(jnp.bfloat16).astype(jnp.float32)

    # Parameters in PyTorch layouts: Conv3d weight (Cout, Cin, kD, kH, kW), 1-D biases.
    params = dict(
        w1=bf16_exact(0.2 * jax.random.normal(ks[0], (C, C, K, K, K), jnp.float32)),
        b1=0.1 * jax.random.normal(ks[1], (C,), jnp.float32),
        g1=1.0 + 0.1 * jax.random.normal(ks[2], (C,), jnp.float32),
        be1=0.1 * jax.random.normal(ks[3], (C,), jnp.float32),
        w2=bf16_exact(0.2 * jax.random.normal(ks[4], (C, C, K, K, K), jnp.float32)),
        b2=0.1 * jax.random.normal(ks[5], (C,), jnp.float32),
        g2=1.0 + 0.1 * jax.random.normal(ks[6], (C,), jnp.float32),
        be2=0.1 * jax.random.normal(ks[7], (C,), jnp.float32),
        wsk=bf16_exact(0.2 * jax.random.normal(ks[8], (C, C, 1, 1, 1), jnp.float32)),
        bsk=0.1 * jax.random.normal(ks[9], (C,), jnp.float32),
    )

    # Input in PyTorch NCDHW convention: (batch=2, channels=4, D=H=W=8).
    x = bf16_exact(jax.random.normal(ks[10], (N, C, S, S, S), jnp.float32))

    prep = prepare_params(params)   # one-time weight transform, reused across calls

    out = jax.block_until_ready(resblock_forward(x, prep))
    ref = jax.block_until_ready(resblock_reference(x, params))
    np.testing.assert_allclose(np.asarray(out), np.asarray(ref), rtol=2e-4, atol=2e-4)
    print("KERNEL_OK")
</pallas_src>

<mosaic_0001>
module attributes {stable_mosaic.version = 11 : i64} {
  func.func @resblock_kernel(%arg0: memref<16x768xbf16, #tpu.memory_space<vmem>>, %arg1: memref<768x144xbf16, #tpu.memory_space<vmem>>, %arg2: memref<3x144x128xbf16, #tpu.memory_space<vmem>>, %arg3: memref<256x128xbf16, #tpu.memory_space<vmem>>, %arg4: memref<144x128xbf16, #tpu.memory_space<vmem>>, %arg5: memref<128x144xbf16, #tpu.memory_space<vmem>>, %arg6: memref<128x128xbf16, #tpu.memory_space<vmem>>, %arg7: memref<128x128xbf16, #tpu.memory_space<vmem>>, %arg8: memref<4x128xf32, #tpu.memory_space<vmem>>, %arg9: memref<16x128xf32, #tpu.memory_space<vmem>>) attributes {dimension_semantics = [], scalar_prefetch = 0 : i64, scratch_operands = 0 : i64, tpu.core_type = #tpu.core_type<tc>} {
    %0 = tpu.iota {dimensions = array<i32: 0>} : vector<16x1xi32>
    %c8_i32 = arith.constant 8 : i32
    %c0_i32 = arith.constant 0 : i32
    %1 = arith.cmpi eq, %c8_i32, %c0_i32 : i32
    %c1_i32 = arith.constant 1 : i32
    %2 = arith.select %1, %c1_i32, %c8_i32 : i32
    %3 = vector.broadcast %2 : i32 to vector<16x1xi32>
    %4 = arith.remsi %0, %3 : vector<16x1xi32>
    %c0_i32_0 = arith.constant 0 : i32
    %5 = vector.broadcast %c0_i32_0 : i32 to vector<16x1xi32>
    %6 = arith.cmpi ne, %4, %5 : vector<16x1xi32>
    %c0_i32_1 = arith.constant 0 : i32
    %7 = vector.broadcast %c0_i32_1 : i32 to vector<16x1xi32>
    %8 = arith.cmpi slt, %4, %7 : vector<16x1xi32>
    %c0_i32_2 = arith.constant 0 : i32
    %9 = arith.cmpi slt, %2, %c0_i32_2 : i32
    %10 = vector.broadcast %9 : i1 to vector<16x1xi1>
    %11 = vector.broadcast %10 : vector<16x1xi1> to vector<16x1xi1>
    %12 = arith.xori %8, %11 : vector<16x1xi1>
    %13 = arith.andi %12, %6 : vector<16x1xi1>
    %14 = vector.broadcast %2 : i32 to vector<16x1xi32>
    %15 = arith.addi %4, %14 : vector<16x1xi32>
    %16 = arith.select %13, %15, %4 : vector<16x1xi1>, vector<16x1xi32>
    %c6_i32 = arith.constant 6 : i32
    %17 = vector.broadcast %c6_i32 : i32 to vector<16x1xi32>
    %18 = arith.cmpi slt, %16, %17 : vector<16x1xi32>
    %19 = arith.extui %18 : vector<16x1xi1> to vector<16x1xi32>
    %20 = arith.sitofp %19 : vector<16x1xi32> to vector<16x1xf32>
    %c4_i32 = arith.constant 4 : i32
    %21 = vector.broadcast %c4_i32 : i32 to vector<16x1xi32>
    %22 = arith.cmpi slt, %16, %21 : vector<16x1xi32>
    %23 = arith.extui %22 : vector<16x1xi1> to vector<16x1xi32>
    %24 = arith.sitofp %23 : vector<16x1xi32> to vector<16x1xf32>
    %c0 = arith.constant 0 : index
    %c0_3 = arith.constant 0 : index
    %25 = vector.load %arg0[%c0, %c0_3] : memref<16x768xbf16, #tpu.memory_space<vmem>>, vector<16x768xbf16>
    %c0_4 = arith.constant 0 : index
    %c0_5 = arith.constant 0 : index
    %26 = vector.load %arg1[%c0_4, %c0_5] : memref<768x144xbf16, #tpu.memory_space<vmem>>, vector<768x144xbf16>
    %cst = arith.constant dense<0.000000e+00> : vector<16x144xf32>
    %27 = tpu.matmul %25, %26, %cst {dimension_numbers = #tpu.dot_dimension_numbers<[1], [0], [0], [1], [0, 0, 1, 1], [], []>} : vector<16x768xbf16>, vector<768x144xbf16>, vector<16x144xf32> -> vector<16x144xf32>
    %28 = vector.extract_strided_slice %25 {offsets = [0, 512], sizes = [16, 256], strides = [1, 1]} : vector<16x768xbf16> to vector<16x256xbf16>
    %c0_6 = arith.constant 0 : index
    %c0_7 = arith.constant 0 : index
    %29 = vector.load %arg3[%c0_6, %c0_7] : memref<256x128xbf16, #tpu.memory_space<vmem>>, vector<256x128xbf16>
    %cst_8 = arith.constant dense<0.000000e+00> : vector<16x128xf32>
    %30 = tpu.matmul %28, %29, %cst_8 {dimension_numbers = #tpu.dot_dimension_numbers<[1], [0], [0], [1], [0, 0, 1, 1], [], []>} : vector<16x256xbf16>, vector<256x128xbf16>, vector<16x128xf32> -> vector<16x128xf32>
    %c0_9 = arith.constant 0 : index
    %c0_10 = arith.constant 0 : index
    %31 = vector.load %arg8[%c0_9, %c0_10] : memref<4x128xf32, #tpu.memory_space<vmem>>, vector<1x128xf32>
    %c1 = arith.constant 1 : index
    %c0_11 = arith.constant 0 : index
    %32 = vector.load %arg8[%c1, %c0_11] : memref<4x128xf32, #tpu.memory_space<vmem>>, vector<1x128xf32>
    %33 = vector.broadcast %20 : vector<16x1xf32> to vector<16x144xf32>
    %34 = arith.mulf %27, %33 : vector<16x144xf32>
    %cst_12 = arith.constant dense<0.000000e+00> : vector<144xf32>
    %35 = vector.multi_reduction <add>, %34, %cst_12 [0] : vector<16x144xf32> to vector<144xf32>
    %36 = vector.shape_cast %35 : vector<144xf32> to vector<1x144xf32>
    %37 = arith.mulf %34, %34 : vector<16x144xf32>
    %cst_13 = arith.constant dense<0.000000e+00> : vector<144xf32>
    %38 = vector.multi_reduction <add>, %37, %cst_13 [0] : vector<16x144xf32> to vector<144xf32>
    %39 = vector.shape_cast %38 : vector<144xf32> to vector<1x144xf32>
    %40 = tpu.concatenate %36, %39 in 0 : vector<1x144xf32>, vector<1x144xf32> -> vector<2x144xf32>
    %c0_14 = arith.constant 0 : index
    %c0_15 = arith.constant 0 : index
    %41 = vector.load %arg4[%c0_14, %c0_15] : memref<144x128xbf16, #tpu.memory_space<vmem>>, vector<144x128xbf16>
    %42 = arith.truncf %40 : vector<2x144xf32> to vector<2x144xbf16>
    %43 = arith.extf %42 : vector<2x144xbf16> to vector<2x144xf32>
    %44 = arith.subf %40, %43 : vector<2x144xf32>
    %45 = arith.truncf %44 : vector<2x144xf32> to vector<2x144xbf16>
    %46 = tpu.concatenate %42, %45 in 0 : vector<2x144xbf16>, vector<2x144xbf16> -> vector<4x144xbf16>
    %cst_16 = arith.constant dense<0.000000e+00> : vector<4x128xf32>
    %47 = tpu.matmul %46, %41, %cst_16 {dimension_numbers = #tpu.dot_dimension_numbers<[1], [0], [0], [1], [0, 0, 1, 1], [], []>} : vector<4x144xbf16>, vector<144x128xbf16>, vector<4x128xf32> -> vector<4x128xf32>
    %48 = vector.extract_strided_slice %47 {offsets = [0, 0], sizes = [2, 128], strides = [1, 1]} : vector<4x128xf32> to vector<2x128xf32>
    %49 = vector.extract_strided_slice %47 {offsets = [2, 0], sizes = [2, 128], strides = [1, 1]} : vector<4x128xf32> to vector<2x128xf32>
    %50 = arith.addf %48, %49 : vector<2x128xf32>
    %cst_17 = arith.constant 0.00231481483 : f32
    %51 = vector.broadcast %cst_17 : f32 to vector<2x128xf32>
    %52 = arith.mulf %50, %51 : vector<2x128xf32>
    %53 = vector.extract_strided_slice %52 {offsets = [0, 0], sizes = [1, 128], strides = [1, 1]} : vector<2x128xf32> to vector<1x128xf32>
    %54 = vector.extract_strided_slice %52 {offsets = [1, 0], sizes = [1, 128], strides = [1, 1]} : vector<2x128xf32> to vector<1x128xf32>
    %55 = arith.mulf %53, %53 : vector<1x128xf32>
    %56 = arith.subf %54, %55 : vector<1x128xf32>
    %cst_18 = arith.constant 9.99999974E-6 : f32
    %57 = vector.broadcast %cst_18 : f32 to vector<1x128xf32>
    %58 = arith.addf %56, %57 : vector<1x128xf32>
    %59 = math.rsqrt %58 : vector<1x128xf32>
    %60 = arith.mulf %31, %59 : vector<1x128xf32>
    %61 = arith.mulf %53, %60 : vector<1x128xf32>
    %62 = arith.subf %32, %61 : vector<1x128xf32>
    %63 = tpu.concatenate %60, %62 in 0 : vector<1x128xf32>, vector<1x128xf32> -> vector<2x128xf32>
    %c0_19 = arith.constant 0 : index
    %c0_20 = arith.constant 0 : index
    %64 = vector.load %arg5[%c0_19, %c0_20] : memref<128x144xbf16, #tpu.memory_space<vmem>>, vector<128x144xbf16>
    %65 = arith.truncf %63 : vector<2x128xf32> to vector<2x128xbf16>
    %66 = arith.extf %65 : vector<2x128xbf16> to vector<2x128xf32>
    %67 = arith.subf %63, %66 : vector<2x128xf32>
    %68 = arith.truncf %67 : vector<2x128xf32> to vector<2x128xbf16>
    %69 = tpu.concatenate %65, %68 in 0 : vector<2x128xbf16>, vector<2x128xbf16> -> vector<4x128xbf16>
    %cst_21 = arith.constant dense<0.000000e+00> : vector<4x144xf32>
    %70 = tpu.matmul %69, %64, %cst_21 {dimension_numbers = #tpu.dot_dimension_numbers<[1], [0], [0], [1], [0, 0, 1, 1], [], []>} : vector<4x128xbf16>, vector<128x144xbf16>, vector<4x144xf32> -> vector<4x144xf32>
    %71 = vector.extract_strided_slice %70 {offsets = [0, 0], sizes = [2, 144], strides = [1, 1]} : vector<4x144xf32> to vector<2x144xf32>
    %72 = vector.extract_strided_slice %70 {offsets = [2, 0], sizes = [2, 144], strides = [1, 1]} : vector<4x144xf32> to vector<2x144xf32>
    %73 = arith.addf %71, %72 : vector<2x144xf32>
    %74 = vector.extract_strided_slice %73 {offsets = [0, 0], sizes = [1, 144], strides = [1, 1]} : vector<2x144xf32> to vector<1x144xf32>
    %75 = vector.extract_strided_slice %73 {offsets = [1, 0], sizes = [1, 144], strides = [1, 1]} : vector<2x144xf32> to vector<1x144xf32>
    %76 = vector.broadcast %74 : vector<1x144xf32> to vector<16x144xf32>
    %77 = arith.mulf %27, %76 : vector<16x144xf32>
    %78 = vector.broadcast %75 : vector<1x144xf32> to vector<16x144xf32>
    %79 = arith.addf %77, %78 : vector<16x144xf32>
    %cst_22 = arith.constant 0.000000e+00 : f32
    %80 = vector.broadcast %cst_22 : f32 to vector<16x144xf32>
    %81 = arith.cmpf oge, %79, %80 : vector<16x144xf32>
    %cst_23 = arith.constant 0.00999999977 : f32
    %82 = vector.broadcast %cst_23 : f32 to vector<16x144xf32>
    %83 = arith.mulf %82, %79 : vector<16x144xf32>
    %84 = arith.select %81, %79, %83 : vector<16x144xi1>, vector<16x144xf32>
    %85 = arith.truncf %84 : vector<16x144xf32> to vector<16x144xbf16>
    %86 = arith.extf %85 : vector<16x144xbf16> to vector<16x144xf32>
    %87 = arith.subf %84, %86 : vector<16x144xf32>
    %88 = arith.truncf %87 : vector<16x144xf32> to vector<16x144xbf16>
    %89 = tpu.concatenate %85, %88 in 0 : vector<16x144xbf16>, vector<16x144xbf16> -> vector<32x144xbf16>
    %c0_24 = arith.constant 0 : index
    %c0_25 = arith.constant 0 : index
    %c0_26 = arith.constant 0 : index
    %90 = vector.load %arg2[%c0_24, %c0_25, %c0_26] : memref<3x144x128xbf16, #tpu.memory_space<vmem>>, vector<1x144x128xbf16>
    %91 = vector.shape_cast %90 : vector<1x144x128xbf16> to vector<144x128xbf16>
    %cst_27 = arith.constant dense<0.000000e+00> : vector<32x128xf32>
    %92 = tpu.matmul %89, %91, %cst_27 {dimension_numbers = #tpu.dot_dimension_numbers<[1], [0], [0], [1], [0, 0, 1, 1], [], []>} : vector<32x144xbf16>, vector<144x128xbf16>, vector<32x128xf32> -> vector<32x128xf32>
    %93 = vector.extract_strided_slice %92 {offsets = [0, 0], sizes = [16, 128], strides = [1, 1]} : vector<32x128xf32> to vector<16x128xf32>
    %94 = vector.extract_strided_slice %92 {offsets = [16, 0], sizes = [16, 128], strides = [1, 1]} : vector<32x128xf32> to vector<16x128xf32>
    %95 = arith.addf %93, %94 : vector<16x128xf32>
    %c1_28 = arith.constant 1 : index
    %c0_29 = arith.constant 0 : index
    %c0_30 = arith.constant 0 : index
    %96 = vector.load %arg2[%c1_28, %c0_29, %c0_30] : memref<3x144x128xbf16, #tpu.memory_space<vmem>>, vector<1x144x128xbf16>
    %97 = vector.shape_cast %96 : vector<1x144x128xbf16> to vector<144x128xbf16>
    %cst_31 = arith.constant dense<0.000000e+00> : vector<32x128xf32>
    %98 = tpu.matmul %89, %97, %cst_31 {dimension_numbers = #tpu.dot_dimension_numbers<[1], [0], [0], [1], [0, 0, 1, 1], [], []>} : vector<32x144xbf16>, vector<144x128xbf16>, vector<32x128xf32> -> vector<32x128xf32>
    %99 = vector.extract_strided_slice %98 {offsets = [0, 0], sizes = [16, 128], strides = [1, 1]} : vector<32x128xf32> to vector<16x128xf32>
    %100 = vector.extract_strided_slice %98 {offsets = [16, 0], sizes = [16, 128], strides = [1, 1]} : vector<32x128xf32> to vector<16x128xf32>
    %101 = arith.addf %99, %100 : vector<16x128xf32>
    %c15_i32 = arith.constant 15 : i32
    %102 = tpu.dynamic_rotate %101 by %c15_i32 dim 0 : vector<16x128xf32>, i32 -> vector<16x128xf32>
    %103 = arith.addf %95, %102 : vector<16x128xf32>
    %c2 = arith.constant 2 : index
    %c0_32 = arith.constant 0 : index
    %c0_33 = arith.constant 0 : index
    %104 = vector.load %arg2[%c2, %c0_32, %c0_33] : memref<3x144x128xbf16, #tpu.memory_space<vmem>>, vector<1x144x128xbf16>
    %105 = vector.shape_cast %104 : vector<1x144x128xbf16> to vector<144x128xbf16>
    %cst_34 = arith.constant dense<0.000000e+00> : vector<32x128xf32>
    %106 = tpu.matmul %89, %105, %cst_34 {dimension_numbers = #tpu.dot_dimension_numbers<[1], [0], [0], [1], [0, 0, 1, 1], [], []>} : vector<32x144xbf16>, vector<144x128xbf16>, vector<32x128xf32> -> vector<32x128xf32>
    %107 = vector.extract_strided_slice %106 {offsets = [0, 0], sizes = [16, 128], strides = [1, 1]} : vector<32x128xf32> to vector<16x128xf32>
    %108 = vector.extract_strided_slice %106 {offsets = [16, 0], sizes = [16, 128], strides = [1, 1]} : vector<32x128xf32> to vector<16x128xf32>
    %109 = arith.addf %107, %108 : vector<16x128xf32>
    %c14_i32 = arith.constant 14 : i32
    %110 = tpu.dynamic_rotate %109 by %c14_i32 dim 0 : vector<16x128xf32>, i32 -> vector<16x128xf32>
    %111 = arith.addf %103, %110 : vector<16x128xf32>
    %c2_35 = arith.constant 2 : index
    %c0_36 = arith.constant 0 : index
    %112 = vector.load %arg8[%c2_35, %c0_36] : memref<4x128xf32, #tpu.memory_space<vmem>>, vector<1x128xf32>
    %c3 = arith.constant 3 : index
    %c0_37 = arith.constant 0 : index
    %113 = vector.load %arg8[%c3, %c0_37] : memref<4x128xf32, #tpu.memory_space<vmem>>, vector<1x128xf32>
    %114 = vector.broadcast %24 : vector<16x1xf32> to vector<16x128xf32>
    %115 = arith.mulf %111, %114 : vector<16x128xf32>
    %cst_38 = arith.constant dense<0.000000e+00> : vector<128xf32>
    %116 = vector.multi_reduction <add>, %115, %cst_38 [0] : vector<16x128xf32> to vector<128xf32>
    %117 = vector.shape_cast %116 : vector<128xf32> to vector<1x128xf32>
    %118 = arith.mulf %115, %115 : vector<16x128xf32>
    %cst_39 = arith.constant dense<0.000000e+00> : vector<128xf32>
    %119 = vector.multi_reduction <add>, %118, %cst_39 [0] : vector<16x128xf32> to vector<128xf32>
    %120 = vector.shape_cast %119 : vector<128xf32> to vector<1x128xf32>
    %121 = tpu.concatenate %117, %120 in 0 : vector<1x128xf32>, vector<1x128xf32> -> vector<2x128xf32>
    %c0_40 = arith.constant 0 : index
    %c0_41 = arith.constant 0 : index
    %122 = vector.load %arg6[%c0_40, %c0_41] : memref<128x128xbf16, #tpu.memory_space<vmem>>, vector<128x128xbf16>
    %123 = arith.truncf %121 : vector<2x128xf32> to vector<2x128xbf16>
    %124 = arith.extf %123 : vector<2x128xbf16> to vector<2x128xf32>
    %125 = arith.subf %121, %124 : vector<2x128xf32>
    %126 = arith.truncf %125 : vector<2x128xf32> to vector<2x128xbf16>
    %127 = tpu.concatenate %123, %126 in 0 : vector<2x128xbf16>, vector<2x128xbf16> -> vector<4x128xbf16>
    %cst_42 = arith.constant dense<0.000000e+00> : vector<4x128xf32>
    %128 = tpu.matmul %127, %122, %cst_42 {dimension_numbers = #tpu.dot_dimension_numbers<[1], [0], [0], [1], [0, 0, 1, 1], [], []>} : vector<4x128xbf16>, vector<128x128xbf16>, vector<4x128xf32> -> vector<4x128xf32>
    %129 = vector.extract_strided_slice %128 {offsets = [0, 0], sizes = [2, 128], strides = [1, 1]} : vector<4x128xf32> to vector<2x128xf32>
    %130 = vector.extract_strided_slice %128 {offsets = [2, 0], sizes = [2, 128], strides = [1, 1]} : vector<4x128xf32> to vector<2x128xf32>
    %131 = arith.addf %129, %130 : vector<2x128xf32>
    %cst_43 = arith.constant 7.812500e-03 : f32
    %132 = vector.broadcast %cst_43 : f32 to vector<2x128xf32>
    %133 = arith.mulf %131, %132 : vector<2x128xf32>
    %134 = vector.extract_strided_slice %133 {offsets = [0, 0], sizes = [1, 128], strides = [1, 1]} : vector<2x128xf32> to vector<1x128xf32>
    %135 = vector.extract_strided_slice %133 {offsets = [1, 0], sizes = [1, 128], strides = [1, 1]} : vector<2x128xf32> to vector<1x128xf32>
    %136 = arith.mulf %134, %134 : vector<1x128xf32>
    %137 = arith.subf %135, %136 : vector<1x128xf32>
    %cst_44 = arith.constant 9.99999974E-6 : f32
    %138 = vector.broadcast %cst_44 : f32 to vector<1x128xf32>
    %139 = arith.addf %137, %138 : vector<1x128xf32>
    %140 = math.rsqrt %139 : vector<1x128xf32>
    %141 = arith.mulf %112, %140 : vector<1x128xf32>
    %142 = arith.mulf %134, %141 : vector<1x128xf32>
    %143 = arith.subf %113, %142 : vector<1x128xf32>
    %144 = tpu.concatenate %141, %143 in 0 : vector<1x128xf32>, vector<1x128xf32> -> vector<2x128xf32>
    %c0_45 = arith.constant 0 : index
    %c0_46 = arith.constant 0 : index
    %145 = vector.load %arg7[%c0_45, %c0_46] : memref<128x128xbf16, #tpu.memory_space<vmem>>, vector<128x128xbf16>
    %146 = arith.truncf %144 : vector<2x128xf32> to vector<2x128xbf16>
    %147 = arith.extf %146 : vector<2x128xbf16> to vector<2x128xf32>
    %148 = arith.subf %144, %147 : vector<2x128xf32>
    %149 = arith.truncf %148 : vector<2x128xf32> to vector<2x128xbf16>
    %150 = tpu.concatenate %146, %149 in 0 : vector<2x128xbf16>, vector<2x128xbf16> -> vector<4x128xbf16>
    %cst_47 = arith.constant dense<0.000000e+00> : vector<4x128xf32>
    %151 = tpu.matmul %150, %145, %cst_47 {dimension_numbers = #tpu.dot_dimension_numbers<[1], [0], [0], [1], [0, 0, 1, 1], [], []>} : vector<4x128xbf16>, vector<128x128xbf16>, vector<4x128xf32> -> vector<4x128xf32>
    %152 = vector.extract_strided_slice %151 {offsets = [0, 0], sizes = [2, 128], strides = [1, 1]} : vector<4x128xf32> to vector<2x128xf32>
    %153 = vector.extract_strided_slice %151 {offsets = [2, 0], sizes = [2, 128], strides = [1, 1]} : vector<4x128xf32> to vector<2x128xf32>
    %154 = arith.addf %152, %153 : vector<2x128xf32>
    %155 = vector.extract_strided_slice %154 {offsets = [0, 0], sizes = [1, 128], strides = [1, 1]} : vector<2x128xf32> to vector<1x128xf32>
    %156 = vector.extract_strided_slice %154 {offsets = [1, 0], sizes = [1, 128], strides = [1, 1]} : vector<2x128xf32> to vector<1x128xf32>
    %157 = vector.broadcast %155 : vector<1x128xf32> to vector<16x128xf32>
    %158 = arith.mulf %111, %157 : vector<16x128xf32>
    %159 = vector.broadcast %156 : vector<1x128xf32> to vector<16x128xf32>
    %160 = arith.addf %158, %159 : vector<16x128xf32>
    %161 = arith.addf %160, %30 : vector<16x128xf32>
    %cst_48 = arith.constant 0.000000e+00 : f32
    %162 = vector.broadcast %cst_48 : f32 to vector<16x128xf32>
    %163 = arith.cmpf oge, %161, %162 : vector<16x128xf32>
    %cst_49 = arith.constant 0.00999999977 : f32
    %164 = vector.broadcast %cst_49 : f32 to vector<16x128xf32>
    %165 = arith.mulf %164, %161 : vector<16x128xf32>
    %166 = arith.select %163, %161, %165 : vector<16x128xi1>, vector<16x128xf32>
    %c0_50 = arith.constant 0 : index
    %c0_51 = arith.constant 0 : index
    %167 = vector.load %arg9[%c0_50, %c0_51] : memref<16x128xf32, #tpu.memory_space<vmem>>, vector<16x128xf32>
    tpu.vector_store %arg9[%c0_50, %c0_51], %166 {strides = array<i32>} : memref<16x128xf32, #tpu.memory_space<vmem>>, vector<16x128xf32>,
    return
  }
}

</mosaic_0001>

<llo_original>
// kernel: resblock_forward.1
$region0: #{resblock_forward.1}
  #allocation0 [shape = 'u32[]', space=smem, size = 0x4, offset = 0x4, fixed_abs, tag = 'smem constant byte address 0x4 - core index']
  #allocation1 [shape = 'u32[144,128]{1,0:T(1,128)}', space=vmem, size = 0x12000, scoped, tag = 'internal scratch']
  %s0 = inlined_call_operand.vmem [shape: bf16[16,768], index: 0, kind: input, shape index: {}]
  %s1 = inlined_call_operand.vmem [shape: bf16[768,144], index: 1, kind: input, shape index: {}]
  %s2 = inlined_call_operand.vmem [shape: bf16[3,144,128], index: 2, kind: input, shape index: {}]
  %s3 = inlined_call_operand.vmem [shape: bf16[256,128], index: 3, kind: input, shape index: {}]
  %s4 = inlined_call_operand.vmem [shape: bf16[144,128], index: 4, kind: input, shape index: {}]
  %s5 = inlined_call_operand.vmem [shape: bf16[128,144], index: 5, kind: input, shape index: {}]
  %s6 = inlined_call_operand.vmem [shape: bf16[128,128], index: 6, kind: input, shape index: {}]
  %s7 = inlined_call_operand.vmem [shape: bf16[128,128], index: 7, kind: input, shape index: {}]
  %s8 = inlined_call_operand.vmem [shape: f32[4,128], index: 8, kind: input, shape index: {}]
  %s9 = inlined_call_operand.vmem [shape: f32[16,128], index: 9, kind: output, shape index: {}]
  %s10 = sld [smem:[#allocation0]]
  $region46: #{resblock_forward.1} parent=0
    _
  %s12 = ssub.s32 1, %s10
  %s13 = scalar_select 0, %s12, %s10
  // Predicated region
  $region2: #{resblock_forward.1} parent=0 // pred_check
    _
  $region3: #{resblock_forward.1} parent=0 // pred_check_branch
    %15 = sbr.rel (0) target = $region5
  $region4: #{resblock_forward.1} parent=0 // pred_region
    _
  $region5: #{resblock_forward.1} parent=0 // pred_fallthru
    _
  // Predicated region
  $region6: #{resblock_forward.1} parent=0 // pred_check
    _
  $region7: #{resblock_forward.1} parent=0 // pred_check_branch
    %17 = sbr.rel (0) target = $region9
  $region8: #{resblock_forward.1} parent=0 // pred_region
    _
  $region9: #{resblock_forward.1} parent=0 // pred_fallthru
    _
  // Predicated region
  $region10: #{resblock_forward.1} parent=0 // pred_check
    _
  $region11: #{resblock_forward.1} parent=0 // pred_check_branch
    %19 = sbr.rel (0) target = $region13
  $region12: #{resblock_forward.1} parent=0 // pred_region
    _
  $region13: #{resblock_forward.1} parent=0 // pred_fallthru
    _
  // Predicated region
  $region14: #{resblock_forward.1} parent=0 // pred_check
    _
  $region15: #{resblock_forward.1} parent=0 // pred_check_branch
    %21 = sbr.rel (0) target = $region17
  $region16: #{resblock_forward.1} parent=0 // pred_region
    _
  $region17: #{resblock_forward.1} parent=0 // pred_fallthru
    _
  // Predicated region
  $region18: #{resblock_forward.1} parent=0 // pred_check
    _
  $region19: #{resblock_forward.1} parent=0 // pred_check_branch
    %23 = sbr.rel (0) target = $region21
  $region20: #{resblock_forward.1} parent=0 // pred_region
    _
  $region21: #{resblock_forward.1} parent=0 // pred_fallthru
    _
  // Predicated region
  $region22: #{resblock_forward.1} parent=0 // pred_check
    _
  $region23: #{resblock_forward.1} parent=0 // pred_check_branch
    %25 = sbr.rel (0) target = $region25
  $region24: #{resblock_forward.1} parent=0 // pred_region
    _
  $region25: #{resblock_forward.1} parent=0 // pred_fallthru
    _
  // Predicated region
  $region26: #{resblock_forward.1} parent=0 // pred_check
    _
  $region27: #{resblock_forward.1} parent=0 // pred_check_branch
    %27 = sbr.rel (0) target = $region29
  $region28: #{resblock_forward.1} parent=0 // pred_region
    _
  $region29: #{resblock_forward.1} parent=0 // pred_fallthru
    _
  // Predicated region
  $region30: #{resblock_forward.1} parent=0 // pred_check
    _
  $region31: #{resblock_forward.1} parent=0 // pred_check_branch
    %29 = sbr.rel (0) target = $region33
  $region32: #{resblock_forward.1} parent=0 // pred_region
    _
  $region33: #{resblock_forward.1} parent=0 // pred_fallthru
    _
  // Predicated region
  $region34: #{resblock_forward.1} parent=0 // pred_check
    _
  $region35: #{resblock_forward.1} parent=0 // pred_check_branch
    %31 = sbr.rel (0) target = $region37
  $region36: #{resblock_forward.1} parent=0 // pred_region
    _
  $region37: #{resblock_forward.1} parent=0 // pred_fallthru
    _
  %v33 = vlaneseq
  %v34 = vshrl.u32 %v33, 7
  %v35 = vadd.s32 %v34, 8
  %vm36 = vcmp.lt.s32.totalorder %v34, 0
  %v37 = vsub.s32 0, %v34
  %v38 = vsel %vm36, %v37, %v34
  %v39 = vshrl.u32 %v38, 3
  %v40 = vand.u32 %v38, 7
  %v41 = vsub.s32 0, %v40
  %v42 = vsel %vm36, %v41, %v40
  %vm43 = vcmp.lt.s32.totalorder %v35, 0
  %v44 = vsub.s32 0, %v35
  %v45 = vsel %vm43, %v44, %v35
  %v46 = vshrl.u32 %v45, 3
  %v47 = vand.u32 %v45, 7
  %v48 = vsub.s32 0, %v47
  %v49 = vsel %vm43, %v48, %v47
  %vm50 = vcmp.ne.s32.totalorder %v42, 0
  %vm51 = vcmp.ne.s32.totalorder %v49, 0
  %vm52 = vcmp.lt.s32.totalorder %v42, 0
  %vm53 = vcmp.lt.s32.totalorder %v49, 0
  %vm54 = vmand %vm52, %vm50
  %vm55 = vmand %vm53, %vm51
  %v56 = vadd.s32 %v42, 8
  %v57 = vadd.s32 %v49, 8
  %v58 = vsel %vm54, %v56, %v42
  %v59 = vsel %vm55, %v57, %v49
  %vm60 = vcmp.lt.s32.totalorder %v58, 6
  %vm61 = vcmp.lt.s32.totalorder %v59, 6
  %v62 = vsel %vm60, 1, 0
  %v63 = vsel %vm61, 1, 0
  %v64 = vcvt.s32.f32 %v62
  %v65 = vcvt.s32.f32 %v63
  %vm66 = vcmp.lt.s32.totalorder %v58, 4
  %vm67 = vcmp.lt.s32.totalorder %v59, 4
  %v68 = vsel %vm66, 1, 0
  %v69 = vsel %vm67, 1, 0
  %v70 = vcvt.s32.f32 %v68
  %v71 = vcvt.s32.f32 %v69
  %v72 = vld [vmem:[%s0] sm:$0xff]
  %v73 = vld [vmem:[%s0 + $0x8] sm:$0xff]
  %v74 = vld [vmem:[%s0 + $0x10] sm:$0xff]
  %v75 = vld [vmem:[%s0 + $0x18] sm:$0xff]
  %v76 = vld [vmem:[%s0 + $0x20] sm:$0xff]
  %v77 = vld [vmem:[%s0 + $0x28] sm:$0xff]
  %v78 = vld [vmem:[%s1] sm:$0xff]
  %v79 = vld [vmem:[%s1 + $0x8] sm:$0xff]
  %v80 = vld [vmem:[%s1 + $0x10] sm:$0xff]
  %v81 = vld [vmem:[%s1 + $0x18] sm:$0xff]
  %v82 = vld [vmem:[%s1 + $0x20] sm:$0xff]
  %v83 = vld [vmem:[%s1 + $0x28] sm:$0xff]
  %v84 = vld [vmem:[%s1 + $0x30] sm:$0xff]
  %v85 = vld [vmem:[%s1 + $0x38] sm:$0xff]
  %v86 = vld [vmem:[%s1 + $0x40] sm:$0xff]
  %v87 = vld [vmem:[%s1 + $0x48] sm:$0xff]
  %v88 = vld [vmem:[%s1 + $0x50] sm:$0xff]
  %v89 = vld [vmem:[%s1 + $0x58] sm:$0xff]
  %v90 = vld [vmem:[%s1 + $0x60] sm:$0xff]
  %v91 = vld [vmem:[%s1 + $0x68] sm:$0xff]
  %v92 = vld [vmem:[%s1 + $0x70] sm:$0xff]
  %v93 = vld [vmem:[%s1 + $0x78] sm:$0xff]
  %v94 = vld [vmem:[%s1 + $0x80] sm:$0xff]
  %v95 = vld [vmem:[%s1 + $0x88] sm:$0xff]
  %v96 = vld [vmem:[%s1 + $0x90] sm:$0xff]
  %v97 = vld [vmem:[%s1 + $0x98] sm:$0xff]
  %v98 = vld [vmem:[%s1 + $0xa0] sm:$0xff]
  %v99 = vld [vmem:[%s1 + $0xa8] sm:$0xff]
  %v100 = vld [vmem:[%s1 + $0xb0] sm:$0xff]
  %v101 = vld [vmem:[%s1 + $0xb8] sm:$0xff]
  %v102 = vld [vmem:[%s1 + $0xc0] sm:$0xff]
  %v103 = vld [vmem:[%s1 + $0xc8] sm:$0xff]
  %v104 = vld [vmem:[%s1 + $0xd0] sm:$0xff]
  %v105 = vld [vmem:[%s1 + $0xd8] sm:$0xff]
  %v106 = vld [vmem:[%s1 + $0xe0] sm:$0xff]
  %v107 = vld [vmem:[%s1 + $0xe8] sm:$0xff]
  %v108 = vld [vmem:[%s1 + $0xf0] sm:$0xff]
  %v109 = vld [vmem:[%s1 + $0xf8] sm:$0xff]
  %v110 = vld [vmem:[%s1 + $0x100] sm:$0xff]
  %v111 = vld [vmem:[%s1 + $0x108] sm:$0xff]
  %v112 = vld [vmem:[%s1 + $0x110] sm:$0xff]
  %v113 = vld [vmem:[%s1 + $0x118] sm:$0xff]
  %v114 = vld [vmem:[%s1 + $0x120] sm:$0xff]
  %v115 = vld [vmem:[%s1 + $0x128] sm:$0xff]
  %v116 = vld [vmem:[%s1 + $0x130] sm:$0xff]
  %v117 = vld [vmem:[%s1 + $0x138] sm:$0xff]
  %v118 = vld [vmem:[%s1 + $0x140] sm:$0xff]
  %v119 = vld [vmem:[%s1 + $0x148] sm:$0xff]
  %v120 = vld [vmem:[%s1 + $0x150] sm:$0xff]
  %v121 = vld [vmem:[%s1 + $0x158] sm:$0xff]
  %v122 = vld [vmem:[%s1 + $0x160] sm:$0xff]
  %v123 = vld [vmem:[%s1 + $0x168] sm:$0xff]
  %v124 = vld [vmem:[%s1 + $0x170] sm:$0xff]
  %v125 = vld [vmem:[%s1 + $0x178] sm:$0xff]
  %v126 = vld [vmem:[%s1 + $0x180] sm:$0xff]
  %v127 = vld [vmem:[%s1 + $0x188] sm:$0xff]
  %v128 = vld [vmem:[%s1 + $0x190] sm:$0xff]
  %v129 = vld [vmem:[%s1 + $0x198] sm:$0xff]
  %v130 = vld [vmem:[%s1 + $0x1a0] sm:$0xff]
  %v131 = vld [vmem:[%s1 + $0x1a8] sm:$0xff]
  %v132 = vld [vmem:[%s1 + $0x1b0] sm:$0xff]
  %v133 = vld [vmem:[%s1 + $0x1b8] sm:$0xff]
  %v134 = vld [vmem:[%s1 + $0x1c0] sm:$0xff]
  %v135 = vld [vmem:[%s1 + $0x1c8] sm:$0xff]
  %v136 = vld [vmem:[%s1 + $0x1d0] sm:$0xff]
  %v137 = vld [vmem:[%s1 + $0x1d8] sm:$0xff]
  %v138 = vld [vmem:[%s1 + $0x1e0] sm:$0xff]
  %v139 = vld [vmem:[%s1 + $0x1e8] sm:$0xff]
  %v140 = vld [vmem:[%s1 + $0x1f0] sm:$0xff]
  %v141 = vld [vmem:[%s1 + $0x1f8] sm:$0xff]
  %v142 = vld [vmem:[%s1 + $0x200] sm:$0xff]
  %v143 = vld [vmem:[%s1 + $0x208] sm:$0xff]
  %v144 = vld [vmem:[%s1 + $0x210] sm:$0xff]
  %v145 = vld [vmem:[%s1 + $0x218] sm:$0xff]
  %v146 = vld [vmem:[%s1 + $0x220] sm:$0xff]
  %v147 = vld [vmem:[%s1 + $0x228] sm:$0xff]
  %v148 = vld [vmem:[%s1 + $0x230] sm:$0xff]
  %v149 = vld [vmem:[%s1 + $0x238] sm:$0xff]
  %v150 = vld [vmem:[%s1 + $0x240] sm:$0xff]
  %v151 = vld [vmem:[%s1 + $0x248] sm:$0xff]
  %v152 = vld [vmem:[%s1 + $0x250] sm:$0xff]
  %v153 = vld [vmem:[%s1 + $0x258] sm:$0xff]
  %v154 = vld [vmem:[%s1 + $0x260] sm:$0xff]
  %v155 = vld [vmem:[%s1 + $0x268] sm:$0xff]
  %v156 = vld [vmem:[%s1 + $0x270] sm:$0xff]
  %v157 = vld [vmem:[%s1 + $0x278] sm:$0xff]
  %v158 = vld [vmem:[%s1 + $0x280] sm:$0xff]
  %v159 = vld [vmem:[%s1 + $0x288] sm:$0xff]
  %v160 = vld [vmem:[%s1 + $0x290] sm:$0xff]
  %v161 = vld [vmem:[%s1 + $0x298] sm:$0xff]
  %v162 = vld [vmem:[%s1 + $0x2a0] sm:$0xff]
  %v163 = vld [vmem:[%s1 + $0x2a8] sm:$0xff]
  %v164 = vld [vmem:[%s1 + $0x2b0] sm:$0xff]
  %v165 = vld [vmem:[%s1 + $0x2b8] sm:$0xff]
  %v166 = vld [vmem:[%s1 + $0x2c0] sm:$0xff]
  %v167 = vld [vmem:[%s1 + $0x2c8] sm:$0xff]
  %v168 = vld [vmem:[%s1 + $0x2d0] sm:$0xff]
  %v169 = vld [vmem:[%s1 + $0x2d8] sm:$0xff]
  %v170 = vld [vmem:[%s1 + $0x2e0] sm:$0xff]
  %v171 = vld [vmem:[%s1 + $0x2e8] sm:$0xff]
  %v172 = vld [vmem:[%s1 + $0x2f0] sm:$0xff]
  %v173 = vld [vmem:[%s1 + $0x2f8] sm:$0xff]
  %v180 = vunpack.c.l.b16 %v72
  %v181 = vunpack.c.h.b16 %v72
  %v182 = vunpack.c.l.b16 %v73
  %v183 = vunpack.c.h.b16 %v73
  %v184 = vunpack.c.l.b16 %v74
  %v185 = vunpack.c.h.b16 %v74
  %v186 = vunpack.c.l.b16 %v75
  %v187 = vunpack.c.h.b16 %v75
  %v188 = vunpack.c.l.b16 %v76
  %v189 = vunpack.c.h.b16 %v76
  %v190 = vunpack.c.l.b16 %v77
  %v191 = vunpack.c.h.b16 %v77
  %v192 = vpack.c.b16 %v186, %v180
  %v193 = vpack.c.b16 %v187, %v181
  %v194 = vpack.c.b16 %v188, %v182
  %v195 = vpack.c.b16 %v189, %v183
  %v196 = vpack.c.b16 %v190, %v184
  %v197 = vpack.c.b16 %v191, %v185
  %v300 = vunpack.c.l.b16 %v78
  %v301 = vunpack.c.h.b16 %v78
  %v302 = vunpack.c.l.b16 %v79
  %v303 = vunpack.c.h.b16 %v79
  %v304 = vunpack.c.l.b16 %v80
  %v305 = vunpack.c.h.b16 %v80
  %v306 = vunpack.c.l.b16 %v81
  %v307 = vunpack.c.h.b16 %v81
  %v308 = vunpack.c.l.b16 %v82
  %v309 = vunpack.c.h.b16 %v82
  %v310 = vunpack.c.l.b16 %v83
  %v311 = vunpack.c.h.b16 %v83
  %v312 = vunpack.c.l.b16 %v84
  %v313 = vunpack.c.h.b16 %v84
  %v314 = vunpack.c.l.b16 %v85
  %v315 = vunpack.c.h.b16 %v85
  %v316 = vunpack.c.l.b16 %v86
  %v317 = vunpack.c.h.b16 %v86
  %v318 = vunpack.c.l.b16 %v87
  %v319 = vunpack.c.h.b16 %v87
  %v320 = vunpack.c.l.b16 %v88
  %v321 = vunpack.c.h.b16 %v88
  %v322 = vunpack.c.l.b16 %v89
  %v323 = vunpack.c.h.b16 %v89
  %v324 = vunpack.c.l.b16 %v90
  %v325 = vunpack.c.h.b16 %v90
  %v326 = vunpack.c.l.b16 %v91
  %v327 = vunpack.c.h.b16 %v91
  %v328 = vunpack.c.l.b16 %v92
  %v329 = vunpack.c.h.b16 %v92
  %v330 = vunpack.c.l.b16 %v93
  %v331 = vunpack.c.h.b16 %v93
  %v332 = vunpack.c.l.b16 %v94
  %v333 = vunpack.c.h.b16 %v94
  %v334 = vunpack.c.l.b16 %v95
  %v335 = vunpack.c.h.b16 %v95
  %v336 = vunpack.c.l.b16 %v96
  %v337 = vunpack.c.h.b16 %v96
  %v338 = vunpack.c.l.b16 %v97
  %v339 = vunpack.c.h.b16 %v97
  %v340 = vunpack.c.l.b16 %v98
  %v341 = vunpack.c.h.b16 %v98
  %v342 = vunpack.c.l.b16 %v99
  %v343 = vunpack.c.h.b16 %v99
  %v344 = vunpack.c.l.b16 %v100
  %v345 = vunpack.c.h.b16 %v100
  %v346 = vunpack.c.l.b16 %v101
  %v347 = vunpack.c.h.b16 %v101
  %v348 = vunpack.c.l.b16 %v102
  %v349 = vunpack.c.h.b16 %v102
  %v350 = vunpack.c.l.b16 %v103
  %v351 = vunpack.c.h.b16 %v103
  %v352 = vunpack.c.l.b16 %v104
  %v353 = vunpack.c.h.b16 %v104
  %v354 = vunpack.c.l.b16 %v105
  %v355 = vunpack.c.h.b16 %v105
  %v356 = vunpack.c.l.b16 %v106
  %v357 = vunpack.c.h.b16 %v106
  %v358 = vunpack.c.l.b16 %v107
  %v359 = vunpack.c.h.b16 %v107
  %v360 = vunpack.c.l.b16 %v108
  %v361 = vunpack.c.h.b16 %v108
  %v362 = vunpack.c.l.b16 %v109
  %v363 = vunpack.c.h.b16 %v109
  %v364 = vunpack.c.l.b16 %v110
  %v365 = vunpack.c.h.b16 %v110
  %v366 = vunpack.c.l.b16 %v111
  %v367 = vunpack.c.h.b16 %v111
  %v368 = vunpack.c.l.b16 %v112
  %v369 = vunpack.c.h.b16 %v112
  %v370 = vunpack.c.l.b16 %v113
  %v371 = vunpack.c.h.b16 %v113
  %v372 = vunpack.c.l.b16 %v114
  %v373 = vunpack.c.h.b16 %v114
  %v374 = vunpack.c.l.b16 %v115
  %v375 = vunpack.c.h.b16 %v115
  %v376 = vunpack.c.l.b16 %v116
  %v377 = vunpack.c.h.b16 %v116
  %v378 = vunpack.c.l.b16 %v117
  %v379 = vunpack.c.h.b16 %v117
  %v380 = vunpack.c.l.b16 %v118
  %v381 = vunpack.c.h.b16 %v118
  %v382 = vunpack.c.l.b16 %v119
  %v383 = vunpack.c.h.b16 %v119
  %v384 = vunpack.c.l.b16 %v120
  %v385 = vunpack.c.h.b16 %v120
  %v386 = vunpack.c.l.b16 %v121
  %v387 = vunpack.c.h.b16 %v121
  %v388 = vunpack.c.l.b16 %v122
  %v389 = vunpack.c.h.b16 %v122
  %v390 = vunpack.c.l.b16 %v123
  %v391 = vunpack.c.h.b16 %v123
  %v392 = vunpack.c.l.b16 %v124
  %v393 = vunpack.c.h.b16 %v124
  %v394 = vunpack.c.l.b16 %v125
  %v395 = vunpack.c.h.b16 %v125
  %v396 = vunpack.c.l.b16 %v126
  %v397 = vunpack.c.h.b16 %v126
  %v398 = vunpack.c.l.b16 %v127
  %v399 = vunpack.c.h.b16 %v127
  %v400 = vunpack.c.l.b16 %v128
  %v401 = vunpack.c.h.b16 %v128
  %v402 = vunpack.c.l.b16 %v129
  %v403 = vunpack.c.h.b16 %v129
  %v404 = vunpack.c.l.b16 %v130
  %v405 = vunpack.c.h.b16 %v130
  %v406 = vunpack.c.l.b16 %v131
  %v407 = vunpack.c.h.b16 %v131
  %v408 = vunpack.c.l.b16 %v132
  %v409 = vunpack.c.h.b16 %v132
  %v410 = vunpack.c.l.b16 %v133
  %v411 = vunpack.c.h.b16 %v133
  %v412 = vunpack.c.l.b16 %v134
  %v413 = vunpack.c.h.b16 %v134
  %v414 = vunpack.c.l.b16 %v135
  %v415 = vunpack.c.h.b16 %v135
  %v416 = vunpack.c.l.b16 %v136
  %v417 = vunpack.c.h.b16 %v136
  %v418 = vunpack.c.l.b16 %v137
  %v419 = vunpack.c.h.b16 %v137
  %v420 = vunpack.c.l.b16 %v138
  %v421 = vunpack.c.h.b16 %v138
  %v422 = vunpack.c.l.b16 %v139
  %v423 = vunpack.c.h.b16 %v139
  %v424 = vunpack.c.l.b16 %v140
  %v425 = vunpack.c.h.b16 %v140
  %v426 = vunpack.c.l.b16 %v141
  %v427 = vunpack.c.h.b16 %v141
  %v428 = vunpack.c.l.b16 %v142
  %v429 = vunpack.c.h.b16 %v142
  %v430 = vunpack.c.l.b16 %v143
  %v431 = vunpack.c.h.b16 %v143
  %v432 = vunpack.c.l.b16 %v144
  %v433 = vunpack.c.h.b16 %v144
  %v434 = vunpack.c.l.b16 %v145
  %v435 = vunpack.c.h.b16 %v145
  %v436 = vunpack.c.l.b16 %v146
  %v437 = vunpack.c.h.b16 %v146
  %v438 = vunpack.c.l.b16 %v147
  %v439 = vunpack.c.h.b16 %v147
  %v440 = vunpack.c.l.b16 %v148
  %v441 = vunpack.c.h.b16 %v148
  %v442 = vunpack.c.l.b16 %v149
  %v443 = vunpack.c.h.b16 %v149
  %v444 = vunpack.c.l.b16 %v150
  %v445 = vunpack.c.h.b16 %v150
  %v446 = vunpack.c.l.b16 %v151
  %v447 = vunpack.c.h.b16 %v151
  %v448 = vunpack.c.l.b16 %v152
  %v449 = vunpack.c.h.b16 %v152
  %v450 = vunpack.c.l.b16 %v153
  %v451 = vunpack.c.h.b16 %v153
  %v452 = vunpack.c.l.b16 %v154
  %v453 = vunpack.c.h.b16 %v154
  %v454 = vunpack.c.l.b16 %v155
  %v455 = vunpack.c.h.b16 %v155
  %v456 = vunpack.c.l.b16 %v156
  %v457 = vunpack.c.h.b16 %v156
  %v458 = vunpack.c.l.b16 %v157
  %v459 = vunpack.c.h.b16 %v157
  %v460 = vunpack.c.l.b16 %v158
  %v461 = vunpack.c.h.b16 %v158
  %v462 = vunpack.c.l.b16 %v159
  %v463 = vunpack.c.h.b16 %v159
  %v464 = vunpack.c.l.b16 %v160
  %v465 = vunpack.c.h.b16 %v160
  %v466 = vunpack.c.l.b16 %v161
  %v467 = vunpack.c.h.b16 %v161
  %v468 = vunpack.c.l.b16 %v162
  %v469 = vunpack.c.h.b16 %v162
  %v470 = vunpack.c.l.b16 %v163
  %v471 = vunpack.c.h.b16 %v163
  %v472 = vunpack.c.l.b16 %v164
  %v473 = vunpack.c.h.b16 %v164
  %v474 = vunpack.c.l.b16 %v165
  %v475 = vunpack.c.h.b16 %v165
  %v476 = vunpack.c.l.b16 %v166
  %v477 = vunpack.c.h.b16 %v166
  %v478 = vunpack.c.l.b16 %v167
  %v479 = vunpack.c.h.b16 %v167
  %v480 = vunpack.c.l.b16 %v168
  %v481 = vunpack.c.h.b16 %v168
  %v482 = vunpack.c.l.b16 %v169
  %v483 = vunpack.c.h.b16 %v169
  %v484 = vunpack.c.l.b16 %v170
  %v485 = vunpack.c.h.b16 %v170
  %v486 = vunpack.c.l.b16 %v171
  %v487 = vunpack.c.h.b16 %v171
  %v488 = vunpack.c.l.b16 %v172
  %v489 = vunpack.c.h.b16 %v172
  %v490 = vunpack.c.l.b16 %v173
  %v491 = vunpack.c.h.b16 %v173
  %v492 = vpack.c.b16 %v302, %v300
  %v493 = vpack.c.b16 %v303, %v301
  %v494 = vpack.c.b16 %v306, %v304
  %v495 = vpack.c.b16 %v307, %v305
  %v496 = vpack.c.b16 %v310, %v308
  %v497 = vpack.c.b16 %v311, %v309
  %v498 = vpack.c.b16 %v314, %v312
  %v499 = vpack.c.b16 %v315, %v313
  %v500 = vpack.c.b16 %v318, %v316
  %v501 = vpack.c.b16 %v319, %v317
  %v502 = vpack.c.b16 %v322, %v320
  %v503 = vpack.c.b16 %v323, %v321
  %v504 = vpack.c.b16 %v326, %v324
  %v505 = vpack.c.b16 %v327, %v325
  %v506 = vpack.c.b16 %v330, %v328
  %v507 = vpack.c.b16 %v331, %v329
  %v508 = vpack.c.b16 %v334, %v332
  %v509 = vpack.c.b16 %v335, %v333
  %v510 = vpack.c.b16 %v338, %v336
  %v511 = vpack.c.b16 %v339, %v337
  %v512 = vpack.c.b16 %v342, %v340
  %v513 = vpack.c.b16 %v343, %v341
  %v514 = vpack.c.b16 %v346, %v344
  %v515 = vpack.c.b16 %v347, %v345
  %v516 = vpack.c.b16 %v350, %v348
  %v517 = vpack.c.b16 %v351, %v349
  %v518 = vpack.c.b16 %v354, %v352
  %v519 = vpack.c.b16 %v355, %v353
  %v520 = vpack.c.b16 %v358, %v356
  %v521 = vpack.c.b16 %v359, %v357
  %v522 = vpack.c.b16 %v362, %v360
  %v523 = vpack.c.b16 %v363, %v361
  %v524 = vpack.c.b16 %v366, %v364
  %v525 = vpack.c.b16 %v367, %v365
  %v526 = vpack.c.b16 %v370, %v368
  %v527 = vpack.c.b16 %v371, %v369
  %v528 = vpack.c.b16 %v374, %v372
  %v529 = vpack.c.b16 %v375, %v373
  %v530 = vpack.c.b16 %v378, %v376
  %v531 = vpack.c.b16 %v379, %v377
  %v532 = vpack.c.b16 %v382, %v380
  %v533 = vpack.c.b16 %v383, %v381
  %v534 = vpack.c.b16 %v386, %v384
  %v535 = vpack.c.b16 %v387, %v385
  %v536 = vpack.c.b16 %v390, %v388
  %v537 = vpack.c.b16 %v391, %v389
  %v538 = vpack.c.b16 %v394, %v392
  %v539 = vpack.c.b16 %v395, %v393
  %v540 = vpack.c.b16 %v398, %v396
  %v541 = vpack.c.b16 %v399, %v397
  %v542 = vpack.c.b16 %v402, %v400
  %v543 = vpack.c.b16 %v403, %v401
  %v544 = vpack.c.b16 %v406, %v404
  %v545 = vpack.c.b16 %v407, %v405
  %v546 = vpack.c.b16 %v410, %v408
  %v547 = vpack.c.b16 %v411, %v409
  %v548 = vpack.c.b16 %v414, %v412
  %v549 = vpack.c.b16 %v415, %v413
  %v550 = vpack.c.b16 %v418, %v416
  %v551 = vpack.c.b16 %v419, %v417
  %v552 = vpack.c.b16 %v422, %v420
  %v553 = vpack.c.b16 %v423, %v421
  %v554 = vpack.c.b16 %v426, %v424
  %v555 = vpack.c.b16 %v427, %v425
  %v556 = vpack.c.b16 %v430, %v428
  %v557 = vpack.c.b16 %v431, %v429
  %v558 = vpack.c.b16 %v434, %v432
  %v559 = vpack.c.b16 %v435, %v433
  %v560 = vpack.c.b16 %v438, %v436
  %v561 = vpack.c.b16 %v439, %v437
  %v562 = vpack.c.b16 %v442, %v440
  %v563 = vpack.c.b16 %v443, %v441
  %v564 = vpack.c.b16 %v446, %v444
  %v565 = vpack.c.b16 %v447, %v445
  %v566 = vpack.c.b16 %v450, %v448
  %v567 = vpack.c.b16 %v451, %v449
  %v568 = vpack.c.b16 %v454, %v452
  %v569 = vpack.c.b16 %v455, %v453
  %v570 = vpack.c.b16 %v458, %v456
  %v571 = vpack.c.b16 %v459, %v457
  %v572 = vpack.c.b16 %v462, %v460
  %v573 = vpack.c.b16 %v463, %v461
  %v574 = vpack.c.b16 %v466, %v464
  %v575 = vpack.c.b16 %v467, %v465
  %v576 = vpack.c.b16 %v470, %v468
  %v577 = vpack.c.b16 %v471, %v469
  %v578 = vpack.c.b16 %v474, %v472
  %v579 = vpack.c.b16 %v475, %v473
  %v580 = vpack.c.b16 %v478, %v476
  %v581 = vpack.c.b16 %v479, %v477
  %v582 = vpack.c.b16 %v482, %v480
  %v583 = vpack.c.b16 %v483, %v481
  %v584 = vpack.c.b16 %v486, %v484
  %v585 = vpack.c.b16 %v487, %v485
  %v586 = vpack.c.b16 %v490, %v488
  %v587 = vpack.c.b16 %v491, %v489
  %684 = vmatprep.subr.bf16.mxu0 %v493
  %685 = vmatpush1.bf16.msra.mxu0 %v492
  %686 = vmatprep.subr.bf16.mxu0 %v495
  %687 = vmatpush1.bf16.msra.mxu0 %v494
  %688 = vmatprep.subr.bf16.mxu0 %v497
  %689 = vmatpush1.bf16.msra.mxu0 %v496
  %690 = vmatprep.subr.bf16.mxu0 %v499
  %691 = vmatpush1.bf16.msra.mxu0 %v498
  %692 = vmatprep.subr.bf16.mxu0 %v501
  %693 = vmatpush1.bf16.msra.mxu0 %v500
  %694 = vmatprep.subr.bf16.mxu0 %v503
  %695 = vmatpush1.bf16.msra.mxu0 %v502
  %696 = vmatprep.subr.bf16.mxu0 %v505
  %697 = vmatpush1.bf16.msra.mxu0 %v504
  %698 = vmatprep.subr.bf16.mxu0 %v507
  %699 = vmatpush1.bf16.msra.mxu0 %v506
  %700 = vmatprep.subr.bf16.mxu0 %v509
  %701 = vmatpush1.bf16.msra.mxu0 %v508
  %702 = vmatprep.subr.bf16.mxu0 %v511
  %703 = vmatpush1.bf16.msra.mxu0 %v510
  %704 = vmatprep.subr.bf16.mxu0 %v513
  %705 = vmatpush1.bf16.msra.mxu0 %v512
  %706 = vmatprep.subr.bf16.mxu0 %v515
  %707 = vmatpush1.bf16.msra.mxu0 %v514
  %708 = vmatprep.subr.bf16.mxu0 %v517
  %709 = vmatpush1.bf16.msra.mxu0 %v516
  %710 = vmatprep.subr.bf16.mxu0 %v519
  %711 = vmatpush1.bf16.msra.mxu0 %v518
  %712 = vmatprep.subr.bf16.mxu0 %v521
  %713 = vmatpush1.bf16.msra.mxu0 %v520
  %714 = vmatprep.subr.bf16.mxu0 %v523
  %715 = vmatpush1.bf16.msra.mxu0 %v522
  %716 = vmatprep.mubr.bf16.mxu0 %v193
  %717 = vmatmul.mubr.bf16.gmra.mrb[0].mxu0 %v192
  %v718 = vpop.f32.mrb[0].mxu0
  %v719 = vadd.f32 0.0, %v718
  %v720 = vpop.f32.mrb[0].mxu0
  %v721 = vadd.f32 0.0, %v720
  %v722 = vpop.f32.mrb[0].mxu0
  %v723 = vadd.f32 0.0, %v722
  %v724 = vpop.f32.mrb[0].mxu0
  %v725 = vadd.f32 0.0, %v724
  %726 = vdwg.mxu0
  %727 = vmatprep.subr.bf16.mxu0 %v525
  %728 = vmatpush1.bf16.msra.mxu0 %v524
  %729 = vmatprep.subr.bf16.mxu0 %v527
  %730 = vmatpush1.bf16.msra.mxu0 %v526
  %731 = vmatprep.subr.bf16.mxu0 %v529
  %732 = vmatpush1.bf16.msra.mxu0 %v528
  %733 = vmatprep.subr.bf16.mxu0 %v531
  %734 = vmatpush1.bf16.msra.mxu0 %v530
  %735 = vmatprep.subr.bf16.mxu0 %v533
  %736 = vmatpush1.bf16.msra.mxu0 %v532
  %737 = vmatprep.subr.bf16.mxu0 %v535
  %738 = vmatpush1.bf16.msra.mxu0 %v534
  %739 = vmatprep.subr.bf16.mxu0 %v537
  %740 = vmatpush1.bf16.msra.mxu0 %v536
  %741 = vmatprep.subr.bf16.mxu0 %v539
  %742 = vmatpush1.bf16.msra.mxu0 %v538
  %743 = vmatprep.subr.bf16.mxu0 %v541
  %744 = vmatpush1.bf16.msra.mxu0 %v540
  %745 = vmatprep.subr.bf16.mxu0 %v543
  %746 = vmatpush1.bf16.msra.mxu0 %v542
  %747 = vmatprep.subr.bf16.mxu0 %v545
  %748 = vmatpush1.bf16.msra.mxu0 %v544
  %749 = vmatprep.subr.bf16.mxu0 %v547
  %750 = vmatpush1.bf16.msra.mxu0 %v546
  %751 = vmatprep.subr.bf16.mxu0 %v549
  %752 = vmatpush1.bf16.msra.mxu0 %v548
  %753 = vmatprep.subr.bf16.mxu0 %v551
  %754 = vmatpush1.bf16.msra.mxu0 %v550
  %755 = vmatprep.subr.bf16.mxu0 %v553
  %756 = vmatpush1.bf16.msra.mxu0 %v552
  %757 = vmatprep.subr.bf16.mxu0 %v555
  %758 = vmatpush1.bf16.msra.mxu0 %v554
  %759 = vmatprep.mubr.bf16.mxu0 %v195
  %760 = vmatmul.mubr.bf16.gmra.mrb[0].mxu0 %v194
  %v761 = vpop.f32.mrb[0].mxu0
  %v762 = vadd.f32 %v719, %v761
  %v763 = vpop.f32.mrb[0].mxu0
  %v764 = vadd.f32 %v721, %v763
  %v765 = vpop.f32.mrb[0].mxu0
  %v766 = vadd.f32 %v723, %v765
  %v767 = vpop.f32.mrb[0].mxu0
  %v768 = vadd.f32 %v725, %v767
  %769 = vdwg.mxu0
  %770 = vmatprep.subr.bf16.mxu0 %v557
  %771 = vmatpush1.bf16.msra.mxu0 %v556
  %772 = vmatprep.subr.bf16.mxu0 %v559
  %773 = vmatpush1.bf16.msra.mxu0 %v558
  %774 = vmatprep.subr.bf16.mxu0 %v561
  %775 = vmatpush1.bf16.msra.mxu0 %v560
  %776 = vmatprep.subr.bf16.mxu0 %v563
  %777 = vmatpush1.bf16.msra.mxu0 %v562
  %778 = vmatprep.subr.bf16.mxu0 %v565
  %779 = vmatpush1.bf16.msra.mxu0 %v564
  %780 = vmatprep.subr.bf16.mxu0 %v567
  %781 = vmatpush1.bf16.msra.mxu0 %v566
  %782 = vmatprep.subr.bf16.mxu0 %v569
  %783 = vmatpush1.bf16.msra.mxu0 %v568
  %784 = vmatprep.subr.bf16.mxu0 %v571
  %785 = vmatpush1.bf16.msra.mxu0 %v570
  %786 = vmatprep.subr.bf16.mxu0 %v573
  %787 = vmatpush1.bf16.msra.mxu0 %v572
  %788 = vmatprep.subr.bf16.mxu0 %v575
  %789 = vmatpush1.bf16.msra.mxu0 %v574
  %790 = vmatprep.subr.bf16.mxu0 %v577
  %791 = vmatpush1.bf16.msra.mxu0 %v576
  %792 = vmatprep.subr.bf16.mxu0 %v579
  %793 = vmatpush1.bf16.msra.mxu0 %v578
  %794 = vmatprep.subr.bf16.mxu0 %v581
  %795 = vmatpush1.bf16.msra.mxu0 %v580
  %796 = vmatprep.subr.bf16.mxu0 %v583
  %797 = vmatpush1.bf16.msra.mxu0 %v582
  %798 = vmatprep.subr.bf16.mxu0 %v585
  %799 = vmatpush1.bf16.msra.mxu0 %v584
  %800 = vmatprep.subr.bf16.mxu0 %v587
  %801 = vmatpush1.bf16.msra.mxu0 %v586
  %802 = vmatprep.mubr.bf16.mxu0 %v197
  %803 = vmatmul.mubr.bf16.gmra.mrb[0].mxu0 %v196
  %v804 = vpop.f32.mrb[0].mxu0
  %v805 = vadd.f32 %v762, %v804
  %v806 = vpop.f32.mrb[0].mxu0
  %v807 = vadd.f32 %v764, %v806
  %v808 = vpop.f32.mrb[0].mxu0
  %v809 = vadd.f32 %v766, %v808
  %v810 = vpop.f32.mrb[0].mxu0
  %v811 = vadd.f32 %v768, %v810
  %812 = vdwg.mxu0
  %v813 = vld [vmem:[%s3] sm:$0xf]
  %v814 = vld [vmem:[%s3 + $0x4] sm:$0xf]
  %v815 = vld [vmem:[%s3 + $0x8] sm:$0xf]
  %v816 = vld [vmem:[%s3 + $0xc] sm:$0xf]
  %v817 = vld [vmem:[%s3 + $0x10] sm:$0xf]
  %v818 = vld [vmem:[%s3 + $0x14] sm:$0xf]
  %v819 = vld [vmem:[%s3 + $0x18] sm:$0xf]
  %v820 = vld [vmem:[%s3 + $0x1c] sm:$0xf]
  %v821 = vld [vmem:[%s3 + $0x20] sm:$0xf]
  %v822 = vld [vmem:[%s3 + $0x24] sm:$0xf]
  %v823 = vld [vmem:[%s3 + $0x28] sm:$0xf]
  %v824 = vld [vmem:[%s3 + $0x2c] sm:$0xf]
  %v825 = vld [vmem:[%s3 + $0x30] sm:$0xf]
  %v826 = vld [vmem:[%s3 + $0x34] sm:$0xf]
  %v827 = vld [vmem:[%s3 + $0x38] sm:$0xf]
  %v828 = vld [vmem:[%s3 + $0x3c] sm:$0xf]
  %v829 = vld [vmem:[%s3 + $0x40] sm:$0xf]
  %v830 = vld [vmem:[%s3 + $0x44] sm:$0xf]
  %v831 = vld [vmem:[%s3 + $0x48] sm:$0xf]
  %v832 = vld [vmem:[%s3 + $0x4c] sm:$0xf]
  %v833 = vld [vmem:[%s3 + $0x50] sm:$0xf]
  %v834 = vld [vmem:[%s3 + $0x54] sm:$0xf]
  %v835 = vld [vmem:[%s3 + $0x58] sm:$0xf]
  %v836 = vld [vmem:[%s3 + $0x5c] sm:$0xf]
  %v837 = vld [vmem:[%s3 + $0x60] sm:$0xf]
  %v838 = vld [vmem:[%s3 + $0x64] sm:$0xf]
  %v839 = vld [vmem:[%s3 + $0x68] sm:$0xf]
  %v840 = vld [vmem:[%s3 + $0x6c] sm:$0xf]
  %v841 = vld [vmem:[%s3 + $0x70] sm:$0xf]
  %v842 = vld [vmem:[%s3 + $0x74] sm:$0xf]
  %v843 = vld [vmem:[%s3 + $0x78] sm:$0xf]
  %v844 = vld [vmem:[%s3 + $0x7c] sm:$0xf]
  %v877 = vunpack.c.l.b16 %v813
  %v878 = vunpack.c.l.b16 %v814
  %v879 = vunpack.c.l.b16 %v815
  %v880 = vunpack.c.l.b16 %v816
  %v881 = vunpack.c.l.b16 %v817
  %v882 = vunpack.c.l.b16 %v818
  %v883 = vunpack.c.l.b16 %v819
  %v884 = vunpack.c.l.b16 %v820
  %v885 = vunpack.c.l.b16 %v821
  %v886 = vunpack.c.l.b16 %v822
  %v887 = vunpack.c.l.b16 %v823
  %v888 = vunpack.c.l.b16 %v824
  %v889 = vunpack.c.l.b16 %v825
  %v890 = vunpack.c.l.b16 %v826
  %v891 = vunpack.c.l.b16 %v827
  %v892 = vunpack.c.l.b16 %v828
  %v893 = vunpack.c.l.b16 %v829
  %v894 = vunpack.c.l.b16 %v830
  %v895 = vunpack.c.l.b16 %v831
  %v896 = vunpack.c.l.b16 %v832
  %v897 = vunpack.c.l.b16 %v833
  %v898 = vunpack.c.l.b16 %v834
  %v899 = vunpack.c.l.b16 %v835
  %v900 = vunpack.c.l.b16 %v836
  %v901 = vunpack.c.l.b16 %v837
  %v902 = vunpack.c.l.b16 %v838
  %v903 = vunpack.c.l.b16 %v839
  %v904 = vunpack.c.l.b16 %v840
  %v905 = vunpack.c.l.b16 %v841
  %v906 = vunpack.c.l.b16 %v842
  %v907 = vunpack.c.l.b16 %v843
  %v908 = vunpack.c.l.b16 %v844
  %v909 = vpack.c.b16 %v878, %v877
  %v910 = vpack.c.b16 %v880, %v879
  %v911 = vpack.c.b16 %v882, %v881
  %v912 = vpack.c.b16 %v884, %v883
  %v913 = vpack.c.b16 %v886, %v885
  %v914 = vpack.c.b16 %v888, %v887
  %v915 = vpack.c.b16 %v890, %v889
  %v916 = vpack.c.b16 %v892, %v891
  %v917 = vpack.c.b16 %v894, %v893
  %v918 = vpack.c.b16 %v896, %v895
  %v919 = vpack.c.b16 %v898, %v897
  %v920 = vpack.c.b16 %v900, %v899
  %v921 = vpack.c.b16 %v902, %v901
  %v922 = vpack.c.b16 %v904, %v903
  %v923 = vpack.c.b16 %v906, %v905
  %v924 = vpack.c.b16 %v908, %v907
  %941 = vmatprep.subr.bf16.mxu0 0
  %942 = vmatpush1.bf16.msra.mxu0 %v909
  %943 = vmatprep.subr.bf16.mxu0 0
  %944 = vmatpush1.bf16.msra.mxu0 %v910
  %945 = vmatprep.subr.bf16.mxu0 0
  %946 = vmatpush1.bf16.msra.mxu0 %v911
  %947 = vmatprep.subr.bf16.mxu0 0
  %948 = vmatpush1.bf16.msra.mxu0 %v912
  %949 = vmatprep.subr.bf16.mxu0 0
  %950 = vmatpush1.bf16.msra.mxu0 %v913
  %951 = vmatprep.subr.bf16.mxu0 0
  %952 = vmatpush1.bf16.msra.mxu0 %v914
  %953 = vmatprep.subr.bf16.mxu0 0
  %954 = vmatpush1.bf16.msra.mxu0 %v915
  %955 = vmatprep.subr.bf16.mxu0 0
  %956 = vmatpush1.bf16.msra.mxu0 %v916
  %957 = vmatprep.subr.bf16.mxu0 0
  %958 = vmatpush1.bf16.msra.mxu0 %v917
  %959 = vmatprep.subr.bf16.mxu0 0
  %960 = vmatpush1.bf16.msra.mxu0 %v918
  %961 = vmatprep.subr.bf16.mxu0 0
  %962 = vmatpush1.bf16.msra.mxu0 %v919
  %963 = vmatprep.subr.bf16.mxu0 0
  %964 = vmatpush1.bf16.msra.mxu0 %v920
  %965 = vmatprep.subr.bf16.mxu0 0
  %966 = vmatpush1.bf16.msra.mxu0 %v921
  %967 = vmatprep.subr.bf16.mxu0 0
  %968 = vmatpush1.bf16.msra.mxu0 %v922
  %969 = vmatprep.subr.bf16.mxu0 0
  %970 = vmatpush1.bf16.msra.mxu0 %v923
  %971 = vmatprep.subr.bf16.mxu0 0
  %972 = vmatpush1.bf16.msra.mxu0 %v924
  %973 = vmatprep.mubr.bf16.mxu0 %v197
  %974 = vmatmul.mubr.bf16.gmra.mrb[0].mxu0 %v196
  %v975 = vpop.f32.mrb[0].mxu0
  %v976 = vadd.f32 0.0, %v975
  %v977 = vpop.f32.mrb[0].mxu0
  %v978 = vpop.f32.mrb[0].mxu0
  %v979 = vadd.f32 0.0, %v978
  %v980 = vpop.f32.mrb[0].mxu0
  %981 = vdwg.mxu0
  %v982 = vld [vmem:[%s8] sm:$0x1]
  %v983 = vld [vmem:[%s8 + $0x1] sm:$0x1]
  %v984 = vmul.f32 %v805, %v64
  %v985 = vmul.f32 %v807, %v64
  %v986 = vmul.f32 %v809, %v65
  %v987 = vmul.f32 %v811, %v65
  %v988 = vadd.f32 %v984, %v986
  %v989 = vrot.slane %v988, 4
  %v990 = vadd.f32 %v988, %v989
  %v991 = vrot.slane %v990, 2
  %v992 = vadd.f32 %v990, %v991
  %v993 = vrot.slane %v992, 1
  %v994 = vadd.f32 %v992, %v993
  %vm995 = vcmask 130048
  %v996 = vsel %vm995, %v985, 0.0
  %v997 = vsel %vm995, %v987, 0.0
  %v998 = vadd.f32 %v996, %v997
  %v999 = vrot.slane %v998, 4
  %v1000 = vadd.f32 %v998, %v999
  %v1001 = vrot.slane %v1000, 2
  %v1002 = vadd.f32 %v1000, %v1001
  %v1003 = vrot.slane %v1002, 1
  %v1004 = vadd.f32 %v1002, %v1003
  %v1005 = vmul.f32 %v984, %v984
  %v1006 = vmul.f32 %v985, %v985
  %v1007 = vmul.f32 %v986, %v986
  %v1008 = vmul.f32 %v987, %v987
  %v1009 = vadd.f32 %v1005, %v1007
  %v1010 = vrot.slane %v1009, 4
  %v1011 = vadd.f32 %v1009, %v1010
  %v1012 = vrot.slane %v1011, 2
  %v1013 = vadd.f32 %v1011, %v1012
  %v1014 = vrot.slane %v1013, 1
  %v1015 = vadd.f32 %v1013, %v1014
  %v1016 = vsel %vm995, %v1006, 0.0
  %v1017 = vsel %vm995, %v1008, 0.0
  %v1018 = vadd.f32 %v1016, %v1017
  %v1019 = vrot.slane %v1018, 4
  %v1020 = vadd.f32 %v1018, %v1019
  %v1021 = vrot.slane %v1020, 2
  %v1022 = vadd.f32 %v1020, %v1021
  %v1023 = vrot.slane %v1022, 1
  %v1024 = vadd.f32 %v1022, %v1023
  %vm1025 = vcmask 1040384
  %v1026 = vsel %vm1025, %v994, %v1015
  %v1027 = vsel %vm1025, %v1004, %v1024
  %v1028 = vld [vmem:[%s4] sm:$0xf]
  %v1029 = vld [vmem:[%s4 + $0x4] sm:$0xf]
  %v1030 = vld [vmem:[%s4 + $0x8] sm:$0xf]
  %v1031 = vld [vmem:[%s4 + $0xc] sm:$0xf]
  %v1032 = vld [vmem:[%s4 + $0x10] sm:$0xf]
  %v1033 = vld [vmem:[%s4 + $0x14] sm:$0xf]
  %v1034 = vld [vmem:[%s4 + $0x18] sm:$0xf]
  %v1035 = vld [vmem:[%s4 + $0x1c] sm:$0xf]
  %v1036 = vld [vmem:[%s4 + $0x20] sm:$0xf]
  %v1037 = vld [vmem:[%s4 + $0x24] sm:$0xf]
  %v1038 = vld [vmem:[%s4 + $0x28] sm:$0xf]
  %v1039 = vld [vmem:[%s4 + $0x2c] sm:$0xf]
  %v1040 = vld [vmem:[%s4 + $0x30] sm:$0xf]
  %v1041 = vld [vmem:[%s4 + $0x34] sm:$0xf]
  %v1042 = vld [vmem:[%s4 + $0x38] sm:$0xf]
  %v1043 = vld [vmem:[%s4 + $0x3c] sm:$0xf]
  %v1044 = vld [vmem:[%s4 + $0x40] sm:$0xf]
  %v1045 = vld [vmem:[%s4 + $0x44] sm:$0xf]
  %v1046 = vpack.c.bf16 %v1026, %v1026
  %v1047 = vpack.c.bf16 %v1027, %v1027
  %v1048 = vunpack.c.l.bf16 %v1046
  %v1049 = vunpack.c.l.bf16 %v1047
  %v1050 = vsub.f32 %v1026, %v1048
  %v1051 = vsub.f32 %v1027, %v1049
  %v1052 = vpack.c.bf16 %v1050, %v1050
  %v1053 = vpack.c.bf16 %v1051, %v1051
  %v1056 = vrot.slane %v1052, 7
  %v1057 = vrot.slane %v1053, 7
  %v1060 = vsel %vm1025, %v1046, %v1056
  %v1064 = vsel %vm1025, %v1047, %v1057
  %v1083 = vunpack.c.l.b16 %v1028
  %v1084 = vunpack.c.l.b16 %v1029
  %v1085 = vunpack.c.l.b16 %v1030
  %v1086 = vunpack.c.l.b16 %v1031
  %v1087 = vunpack.c.l.b16 %v1032
  %v1088 = vunpack.c.l.b16 %v1033
  %v1089 = vunpack.c.l.b16 %v1034
  %v1090 = vunpack.c.l.b16 %v1035
  %v1091 = vunpack.c.l.b16 %v1036
  %v1092 = vunpack.c.l.b16 %v1037
  %v1093 = vunpack.c.l.b16 %v1038
  %v1094 = vunpack.c.l.b16 %v1039
  %v1095 = vunpack.c.l.b16 %v1040
  %v1096 = vunpack.c.l.b16 %v1041
  %v1097 = vunpack.c.l.b16 %v1042
  %v1098 = vunpack.c.l.b16 %v1043
  %v1099 = vunpack.c.l.b16 %v1044
  %v1100 = vunpack.c.l.b16 %v1045
  %v1101 = vpack.c.b16 %v1084, %v1083
  %v1102 = vpack.c.b16 %v1086, %v1085
  %v1103 = vpack.c.b16 %v1088, %v1087
  %v1104 = vpack.c.b16 %v1090, %v1089
  %v1105 = vpack.c.b16 %v1092, %v1091
  %v1106 = vpack.c.b16 %v1094, %v1093
  %v1107 = vpack.c.b16 %v1096, %v1095
  %v1108 = vpack.c.b16 %v1098, %v1097
  %v1109 = vpack.c.b16 %v1100, %v1099
  %v1119 = vsel %vm995, %v1064, 0
  %1121 = vmatprep.subr.bf16.mxu0 0
  %1122 = vmatpush1.bf16.msra.mxu0 %v1101
  %1123 = vmatprep.subr.bf16.mxu0 0
  %1124 = vmatpush1.bf16.msra.mxu0 %v1102
  %1125 = vmatprep.subr.bf16.mxu0 0
  %1126 = vmatpush1.bf16.msra.mxu0 %v1103
  %1127 = vmatprep.subr.bf16.mxu0 0
  %1128 = vmatpush1.bf16.msra.mxu0 %v1104
  %1129 = vmatprep.subr.bf16.mxu0 0
  %1130 = vmatpush1.bf16.msra.mxu0 %v1105
  %1131 = vmatprep.subr.bf16.mxu0 0
  %1132 = vmatpush1.bf16.msra.mxu0 %v1106
  %1133 = vmatprep.subr.bf16.mxu0 0
  %1134 = vmatpush1.bf16.msra.mxu0 %v1107
  %1135 = vmatprep.subr.bf16.mxu0 0
  %1136 = vmatpush1.bf16.msra.mxu0 %v1108
  %1137 = vmatprep.subr.bf16.mxu0 0
  %1138 = vmatpush1.bf16.msra.mxu0 %v1109
  %1139 = vmatprep.subr.bf16.mxu0 0
  %1140 = vmatpush1.bf16.msra.mxu0 0
  %1141 = vmatprep.subr.bf16.mxu0 0
  %1142 = vmatpush1.bf16.msra.mxu0 0
  %1143 = vmatprep.subr.bf16.mxu0 0
  %1144 = vmatpush1.bf16.msra.mxu0 0
  %1145 = vmatprep.subr.bf16.mxu0 0
  %1146 = vmatpush1.bf16.msra.mxu0 0
  %1147 = vmatprep.subr.bf16.mxu0 0
  %1148 = vmatpush1.bf16.msra.mxu0 0
  %1149 = vmatprep.subr.bf16.mxu0 0
  %1150 = vmatpush1.bf16.msra.mxu0 0
  %1151 = vmatprep.subr.bf16.mxu0 0
  %1152 = vmatpush1.bf16.msra.mxu0 0
  %1153 = vmatprep.mubr.bf16.mxu0 %v1119
  %1154 = vmatmul.mubr.bf16.gmra.mrb[0].mxu0 %v1060
  %v1155 = vpop.f32.mrb[0].mxu0
  %v1156 = vadd.f32 0.0, %v1155
  %v1157 = vpop.f32.mrb[0].mxu0
  %v1158 = vpop.f32.mrb[0].mxu0
  %v1159 = vpop.f32.mrb[0].mxu0
  %1160 = vdwg.mxu0
  %v1162 = vrot.slane %v1156, 2
  %v1164 = vadd.f32 %v1156, %v1162
  %v1165 = vmul.f32 %v1164, 0.0023148148
  %v1166 = vmul.f32 %v1165, %v1165
  %v1168 = vrot.slane %v1166, 7
  %v1170 = vsub.f32 %v1165, %v1168
  %v1171 = vadd.f32 %v1170, 1e-05
  %v1172 = vrsqrt.pop %v1171
  %v1174 = vrot.slane %v1172, 1
  %v1176 = vmul.f32 %v982, %v1174
  %v1177 = vmul.f32 %v1165, %v1176
  %v1178 = vsub.f32 %v983, %v1177
  %v1180 = vrot.slane %v1178, 7
  %v1182 = vsel %vm1025, %v1176, %v1180
  %v1183 = vld [vmem:[%s5] sm:$0xff]
  %v1184 = vld [vmem:[%s5 + $0x8] sm:$0xff]
  %v1185 = vld [vmem:[%s5 + $0x10] sm:$0xff]
  %v1186 = vld [vmem:[%s5 + $0x18] sm:$0xff]
  %v1187 = vld [vmem:[%s5 + $0x20] sm:$0xff]
  %v1188 = vld [vmem:[%s5 + $0x28] sm:$0xff]
  %v1189 = vld [vmem:[%s5 + $0x30] sm:$0xff]
  %v1190 = vld [vmem:[%s5 + $0x38] sm:$0xff]
  %v1191 = vld [vmem:[%s5 + $0x40] sm:$0xff]
  %v1192 = vld [vmem:[%s5 + $0x48] sm:$0xff]
  %v1193 = vld [vmem:[%s5 + $0x50] sm:$0xff]
  %v1194 = vld [vmem:[%s5 + $0x58] sm:$0xff]
  %v1195 = vld [vmem:[%s5 + $0x60] sm:$0xff]
  %v1196 = vld [vmem:[%s5 + $0x68] sm:$0xff]
  %v1197 = vld [vmem:[%s5 + $0x70] sm:$0xff]
  %v1198 = vld [vmem:[%s5 + $0x78] sm:$0xff]
  %v1199 = vpack.c.bf16 %v1182, %v1182
  %v1200 = vunpack.c.l.bf16 %v1199
  %v1201 = vsub.f32 %v1182, %v1200
  %v1202 = vpack.c.bf16 %v1201, %v1201
  %v1204 = vrot.slane %v1202, 7
  %v1207 = vsel %vm1025, %v1199, %v1204
  %v1225 = vunpack.c.l.b16 %v1183
  %v1226 = vunpack.c.h.b16 %v1183
  %v1227 = vunpack.c.l.b16 %v1184
  %v1228 = vunpack.c.h.b16 %v1184
  %v1229 = vunpack.c.l.b16 %v1185
  %v1230 = vunpack.c.h.b16 %v1185
  %v1231 = vunpack.c.l.b16 %v1186
  %v1232 = vunpack.c.h.b16 %v1186
  %v1233 = vunpack.c.l.b16 %v1187
  %v1234 = vunpack.c.h.b16 %v1187
  %v1235 = vunpack.c.l.b16 %v1188
  %v1236 = vunpack.c.h.b16 %v1188
  %v1237 = vunpack.c.l.b16 %v1189
  %v1238 = vunpack.c.h.b16 %v1189
  %v1239 = vunpack.c.l.b16 %v1190
  %v1240 = vunpack.c.h.b16 %v1190
  %v1241 = vunpack.c.l.b16 %v1191
  %v1242 = vunpack.c.h.b16 %v1191
  %v1243 = vunpack.c.l.b16 %v1192
  %v1244 = vunpack.c.h.b16 %v1192
  %v1245 = vunpack.c.l.b16 %v1193
  %v1246 = vunpack.c.h.b16 %v1193
  %v1247 = vunpack.c.l.b16 %v1194
  %v1248 = vunpack.c.h.b16 %v1194
  %v1249 = vunpack.c.l.b16 %v1195
  %v1250 = vunpack.c.h.b16 %v1195
  %v1251 = vunpack.c.l.b16 %v1196
  %v1252 = vunpack.c.h.b16 %v1196
  %v1253 = vunpack.c.l.b16 %v1197
  %v1254 = vunpack.c.h.b16 %v1197
  %v1255 = vunpack.c.l.b16 %v1198
  %v1256 = vunpack.c.h.b16 %v1198
  %v1257 = vpack.c.b16 %v1227, %v1225
  %v1258 = vpack.c.b16 %v1228, %v1226
  %v1259 = vpack.c.b16 %v1231, %v1229
  %v1260 = vpack.c.b16 %v1232, %v1230
  %v1261 = vpack.c.b16 %v1235, %v1233
  %v1262 = vpack.c.b16 %v1236, %v1234
  %v1263 = vpack.c.b16 %v1239, %v1237
  %v1264 = vpack.c.b16 %v1240, %v1238
  %v1265 = vpack.c.b16 %v1243, %v1241
  %v1266 = vpack.c.b16 %v1244, %v1242
  %v1267 = vpack.c.b16 %v1247, %v1245
  %v1268 = vpack.c.b16 %v1248, %v1246
  %v1269 = vpack.c.b16 %v1251, %v1249
  %v1270 = vpack.c.b16 %v1252, %v1250
  %v1271 = vpack.c.b16 %v1255, %v1253
  %v1272 = vpack.c.b16 %v1256, %v1254
  %1289 = vmatprep.subr.bf16.mxu0 %v1258
  %1290 = vmatpush1.bf16.msra.mxu0 %v1257
  %1291 = vmatprep.subr.bf16.mxu0 %v1260
  %1292 = vmatpush1.bf16.msra.mxu0 %v1259
  %1293 = vmatprep.subr.bf16.mxu0 %v1262
  %1294 = vmatpush1.bf16.msra.mxu0 %v1261
  %1295 = vmatprep.subr.bf16.mxu0 %v1264
  %1296 = vmatpush1.bf16.msra.mxu0 %v1263
  %1297 = vmatprep.subr.bf16.mxu0 %v1266
  %1298 = vmatpush1.bf16.msra.mxu0 %v1265
  %1299 = vmatprep.subr.bf16.mxu0 %v1268
  %1300 = vmatpush1.bf16.msra.mxu0 %v1267
  %1301 = vmatprep.subr.bf16.mxu0 %v1270
  %1302 = vmatpush1.bf16.msra.mxu0 %v1269
  %1303 = vmatprep.subr.bf16.mxu0 %v1272
  %1304 = vmatpush1.bf16.msra.mxu0 %v1271
  %1305 = vmatprep.subr.bf16.mxu0 0
  %1306 = vmatpush1.bf16.msra.mxu0 0
  %1307 = vmatprep.subr.bf16.mxu0 0
  %1308 = vmatpush1.bf16.msra.mxu0 0
  %1309 = vmatprep.subr.bf16.mxu0 0
  %1310 = vmatpush1.bf16.msra.mxu0 0
  %1311 = vmatprep.subr.bf16.mxu0 0
  %1312 = vmatpush1.bf16.msra.mxu0 0
  %1313 = vmatprep.subr.bf16.mxu0 0
  %1314 = vmatpush1.bf16.msra.mxu0 0
  %1315 = vmatprep.subr.bf16.mxu0 0
  %1316 = vmatpush1.bf16.msra.mxu0 0
  %1317 = vmatprep.subr.bf16.mxu0 0
  %1318 = vmatpush1.bf16.msra.mxu0 0
  %1319 = vmatprep.subr.bf16.mxu0 0
  %1320 = vmatpush1.bf16.msra.mxu0 0
  %1321 = vmatprep.mubr.bf16.mxu0 0
  %1322 = vmatmul.mubr.bf16.gmra.mrb[0].mxu0 %v1207
  %v1323 = vpop.f32.mrb[0].mxu0
  %v1324 = vadd.f32 0.0, %v1323
  %v1325 = vpop.f32.mrb[0].mxu0
  %v1326 = vadd.f32 0.0, %v1325
  %v1327 = vpop.f32.mrb[0].mxu0
  %v1328 = vpop.f32.mrb[0].mxu0
  %1329 = vdwg.mxu0
  %v1332 = vrot.slane %v1324, 2
  %v1333 = vrot.slane %v1326, 2
  %v1336 = vadd.f32 %v1324, %v1332
  %v1337 = vadd.f32 %v1326, %v1333
  %v1338 = vlaneseq
  %v1339 = vshrl.u32 %v1338, 7
  %v1340 = vsub.s32 0, %v1339
  %v1341 = vrot.slane %v1336, %v1340
  %v1342 = vlaneseq
  %v1343 = vshrl.u32 %v1342, 7
  %v1344 = vsub.s32 0, %v1343
  %v1345 = vrot.slane %v1337, %v1344
  %v1346 = vmul.f32 %v805, %v1341
  %v1347 = vmul.f32 %v807, %v1345
  %v1348 = vmul.f32 %v809, %v1341
  %v1349 = vmul.f32 %v811, %v1345
  %v1350 = vlaneseq
  %v1351 = vshrl.u32 %v1350, 7
  %v1352 = vsub.s32 1, %v1351
  %v1353 = vrot.slane %v1336, %v1352
  %v1354 = vlaneseq
  %v1355 = vshrl.u32 %v1354, 7
  %v1356 = vsub.s32 1, %v1355
  %v1357 = vrot.slane %v1337, %v1356
  %v1358 = vadd.f32 %v1346, %v1353
  %v1359 = vadd.f32 %v1347, %v1357
  %v1360 = vadd.f32 %v1348, %v1353
  %v1361 = vadd.f32 %v1349, %v1357
  %vm1362 = vcmp.ge.f32.partialorder %v1358, 0.0
  %vm1363 = vcmp.ge.f32.partialorder %v1359, 0.0
  %vm1364 = vcmp.ge.f32.partialorder %v1360, 0.0
  %vm1365 = vcmp.ge.f32.partialorder %v1361, 0.0
  %v1366 = vmul.f32 %v1358, 0.01
  %v1367 = vmul.f32 %v1359, 0.01
  %v1368 = vmul.f32 %v1360, 0.01
  %v1369 = vmul.f32 %v1361, 0.01
  %v1370 = vsel %vm1362, %v1358, %v1366
  %v1371 = vsel %vm1363, %v1359, %v1367
  %v1372 = vsel %vm1364, %v1360, %v1368
  %v1373 = vsel %vm1365, %v1361, %v1369
  %v1374 = vpack.c.bf16 %v1372, %v1370
  %v1375 = vpack.c.bf16 %v1373, %v1371
  %v1376 = vunpack.c.l.bf16 %v1374
  %v1377 = vunpack.c.l.bf16 %v1375
  %v1378 = vunpack.c.h.bf16 %v1374
  %v1379 = vunpack.c.h.bf16 %v1375
  %v1380 = vsub.f32 %v1370, %v1376
  %v1381 = vsub.f32 %v1371, %v1377
  %v1382 = vsub.f32 %v1372, %v1378
  %v1383 = vsub.f32 %v1373, %v1379
  %v1384 = vpack.c.bf16 %v1382, %v1380
  %v1385 = vpack.c.bf16 %v1383, %v1381
  %v1386 = vld [vmem:[%s2] sm:$0xf]
  %v1387 = vld [vmem:[%s2 + $0x4] sm:$0xf]
  %v1388 = vld [vmem:[%s2 + $0x8] sm:$0xf]
  %v1389 = vld [vmem:[%s2 + $0xc] sm:$0xf]
  %v1390 = vld [vmem:[%s2 + $0x10] sm:$0xf]
  %v1391 = vld [vmem:[%s2 + $0x14] sm:$0xf]
  %v1392 = vld [vmem:[%s2 + $0x18] sm:$0xf]
  %v1393 = vld [vmem:[%s2 + $0x1c] sm:$0xf]
  %v1394 = vld [vmem:[%s2 + $0x20] sm:$0xf]
  %v1395 = vld [vmem:[%s2 + $0x24] sm:$0xf]
  %v1396 = vld [vmem:[%s2 + $0x28] sm:$0xf]
  %v1397 = vld [vmem:[%s2 + $0x2c] sm:$0xf]
  %v1398 = vld [vmem:[%s2 + $0x30] sm:$0xf]
  %v1399 = vld [vmem:[%s2 + $0x34] sm:$0xf]
  %v1400 = vld [vmem:[%s2 + $0x38] sm:$0xf]
  %v1401 = vld [vmem:[%s2 + $0x3c] sm:$0xf]
  %v1402 = vld [vmem:[%s2 + $0x40] sm:$0xf]
  %v1403 = vld [vmem:[%s2 + $0x44] sm:$0xf]
  %v1422 = vunpack.c.l.b16 %v1386
  %v1423 = vunpack.c.l.b16 %v1387
  %v1424 = vunpack.c.l.b16 %v1388
  %v1425 = vunpack.c.l.b16 %v1389
  %v1426 = vunpack.c.l.b16 %v1390
  %v1427 = vunpack.c.l.b16 %v1391
  %v1428 = vunpack.c.l.b16 %v1392
  %v1429 = vunpack.c.l.b16 %v1393
  %v1430 = vunpack.c.l.b16 %v1394
  %v1431 = vunpack.c.l.b16 %v1395
  %v1432 = vunpack.c.l.b16 %v1396
  %v1433 = vunpack.c.l.b16 %v1397
  %v1434 = vunpack.c.l.b16 %v1398
  %v1435 = vunpack.c.l.b16 %v1399
  %v1436 = vunpack.c.l.b16 %v1400
  %v1437 = vunpack.c.l.b16 %v1401
  %v1438 = vunpack.c.l.b16 %v1402
  %v1439 = vunpack.c.l.b16 %v1403
  %v1440 = vpack.c.b16 %v1423, %v1422
  %v1441 = vpack.c.b16 %v1425, %v1424
  %v1442 = vpack.c.b16 %v1427, %v1426
  %v1443 = vpack.c.b16 %v1429, %v1428
  %v1444 = vpack.c.b16 %v1431, %v1430
  %v1445 = vpack.c.b16 %v1433, %v1432
  %v1446 = vpack.c.b16 %v1435, %v1434
  %v1447 = vpack.c.b16 %v1437, %v1436
  %v1448 = vpack.c.b16 %v1439, %v1438
  %v1459 = vsel %vm995, %v1375, 0
  %v1462 = vsel %vm995, %v1385, 0
  %1464 = vmatprep.subr.bf16.mxu0 0
  %1465 = vmatpush1.bf16.msra.mxu0 %v1440
  %1466 = vmatprep.subr.bf16.mxu0 0
  %1467 = vmatpush1.bf16.msra.mxu0 %v1441
  %1468 = vmatprep.subr.bf16.mxu0 0
  %1469 = vmatpush1.bf16.msra.mxu0 %v1442
  %1470 = vmatprep.subr.bf16.mxu0 0
  %1471 = vmatpush1.bf16.msra.mxu0 %v1443
  %1472 = vmatprep.subr.bf16.mxu0 0
  %1473 = vmatpush1.bf16.msra.mxu0 %v1444
  %1474 = vmatprep.subr.bf16.mxu0 0
  %1475 = vmatpush1.bf16.msra.mxu0 %v1445
  %1476 = vmatprep.subr.bf16.mxu0 0
  %1477 = vmatpush1.bf16.msra.mxu0 %v1446
  %1478 = vmatprep.subr.bf16.mxu0 0
  %1479 = vmatpush1.bf16.msra.mxu0 %v1447
  %1480 = vmatprep.subr.bf16.mxu0 0
  %1481 = vmatpush1.bf16.msra.mxu0 %v1448
  %1482 = vmatprep.subr.bf16.mxu0 0
  %1483 = vmatpush1.bf16.msra.mxu0 0
  %1484 = vmatprep.subr.bf16.mxu0 0
  %1485 = vmatpush1.bf16.msra.mxu0 0
  %1486 = vmatprep.subr.bf16.mxu0 0
  %1487 = vmatpush1.bf16.msra.mxu0 0
  %1488 = vmatprep.subr.bf16.mxu0 0
  %1489 = vmatpush1.bf16.msra.mxu0 0
  %1490 = vmatprep.subr.bf16.mxu0 0
  %1491 = vmatpush1.bf16.msra.mxu0 0
  %1492 = vmatprep.subr.bf16.mxu0 0
  %1493 = vmatpush1.bf16.msra.mxu0 0
  %1494 = vmatprep.subr.bf16.mxu0 0
  %1495 = vmatpush1.bf16.msra.mxu0 0
  %1496 = vmatprep.mubr.bf16.mxu0 %v1459
  %1497 = vmatmul.mubr.bf16.gmra.mrb[0].mxu0 %v1374
  %v1498 = vpop.f32.mrb[0].mxu0
  %v1499 = vadd.f32 0.0, %v1498
  %v1500 = vpop.f32.mrb[0].mxu0
  %v1501 = vpop.f32.mrb[0].mxu0
  %v1502 = vadd.f32 0.0, %v1501
  %v1503 = vpop.f32.mrb[0].mxu0
  %1504 = vmatprep.mubr.bf16.mxu0 %v1462
  %1505 = vmatmul.mubr.bf16.gmra.mrb[0].mxu0 %v1384
  %v1506 = vpop.f32.mrb[0].mxu0
  %v1507 = vadd.f32 0.0, %v1506
  %v1508 = vpop.f32.mrb[0].mxu0
  %v1509 = vpop.f32.mrb[0].mxu0
  %v1510 = vadd.f32 0.0, %v1509
  %v1511 = vpop.f32.mrb[0].mxu0
  %1512 = vdwg.mxu0
  %v1513 = vadd.f32 %v1499, %v1507
  %v1514 = vadd.f32 %v1502, %v1510
  %s1515 = scalar_lea.vmem %s2, 72
  %v1516 = vld [vmem:[%s1515] sm:$0xf]
  %v1517 = vld [vmem:[%s1515 + $0x4] sm:$0xf]
  %v1518 = vld [vmem:[%s1515 + $0x8] sm:$0xf]
  %v1519 = vld [vmem:[%s1515 + $0xc] sm:$0xf]
  %v1520 = vld [vmem:[%s1515 + $0x10] sm:$0xf]
  %v1521 = vld [vmem:[%s1515 + $0x14] sm:$0xf]
  %v1522 = vld [vmem:[%s1515 + $0x18] sm:$0xf]
  %v1523 = vld [vmem:[%s1515 + $0x1c] sm:$0xf]
  %v1524 = vld [vmem:[%s1515 + $0x20] sm:$0xf]
  %v1525 = vld [vmem:[%s1515 + $0x24] sm:$0xf]
  %v1526 = vld [vmem:[%s1515 + $0x28] sm:$0xf]
  %v1527 = vld [vmem:[%s1515 + $0x2c] sm:$0xf]
  %v1528 = vld [vmem:[%s1515 + $0x30] sm:$0xf]
  %v1529 = vld [vmem:[%s1515 + $0x34] sm:$0xf]
  %v1530 = vld [vmem:[%s1515 + $0x38] sm:$0xf]
  %v1531 = vld [vmem:[%s1515 + $0x3c] sm:$0xf]
  %v1532 = vld [vmem:[%s1515 + $0x40] sm:$0xf]
  %v1533 = vld [vmem:[%s1515 + $0x44] sm:$0xf]
  %v1552 = vunpack.c.l.b16 %v1516
  %v1553 = vunpack.c.l.b16 %v1517
  %v1554 = vunpack.c.l.b16 %v1518
  %v1555 = vunpack.c.l.b16 %v1519
  %v1556 = vunpack.c.l.b16 %v1520
  %v1557 = vunpack.c.l.b16 %v1521
  %v1558 = vunpack.c.l.b16 %v1522
  %v1559 = vunpack.c.l.b16 %v1523
  %v1560 = vunpack.c.l.b16 %v1524
  %v1561 = vunpack.c.l.b16 %v1525
  %v1562 = vunpack.c.l.b16 %v1526
  %v1563 = vunpack.c.l.b16 %v1527
  %v1564 = vunpack.c.l.b16 %v1528
  %v1565 = vunpack.c.l.b16 %v1529
  %v1566 = vunpack.c.l.b16 %v1530
  %v1567 = vunpack.c.l.b16 %v1531
  %v1568 = vunpack.c.l.b16 %v1532
  %v1569 = vunpack.c.l.b16 %v1533
  %v1570 = vpack.c.b16 %v1553, %v1552
  %v1571 = vpack.c.b16 %v1555, %v1554
  %v1572 = vpack.c.b16 %v1557, %v1556
  %v1573 = vpack.c.b16 %v1559, %v1558
  %v1574 = vpack.c.b16 %v1561, %v1560
  %v1575 = vpack.c.b16 %v1563, %v1562
  %v1576 = vpack.c.b16 %v1565, %v1564
  %v1577 = vpack.c.b16 %v1567, %v1566
  %v1578 = vpack.c.b16 %v1569, %v1568
  %1588 = vmatprep.subr.bf16.mxu0 0
  %1589 = vmatpush1.bf16.msra.mxu0 %v1570
  %1590 = vmatprep.subr.bf16.mxu0 0
  %1591 = vmatpush1.bf16.msra.mxu0 %v1571
  %1592 = vmatprep.subr.bf16.mxu0 0
  %1593 = vmatpush1.bf16.msra.mxu0 %v1572
  %1594 = vmatprep.subr.bf16.mxu0 0
  %1595 = vmatpush1.bf16.msra.mxu0 %v1573
  %1596 = vmatprep.subr.bf16.mxu0 0
  %1597 = vmatpush1.bf16.msra.mxu0 %v1574
  %1598 = vmatprep.subr.bf16.mxu0 0
  %1599 = vmatpush1.bf16.msra.mxu0 %v1575
  %1600 = vmatprep.subr.bf16.mxu0 0
  %1601 = vmatpush1.bf16.msra.mxu0 %v1576
  %1602 = vmatprep.subr.bf16.mxu0 0
  %1603 = vmatpush1.bf16.msra.mxu0 %v1577
  %1604 = vmatprep.subr.bf16.mxu0 0
  %1605 = vmatpush1.bf16.msra.mxu0 %v1578
  %1606 = vmatprep.subr.bf16.mxu0 0
  %1607 = vmatpush1.bf16.msra.mxu0 0
  %1608 = vmatprep.subr.bf16.mxu0 0
  %1609 = vmatpush1.bf16.msra.mxu0 0
  %1610 = vmatprep.subr.bf16.mxu0 0
  %1611 = vmatpush1.bf16.msra.mxu0 0
  %1612 = vmatprep.subr.bf16.mxu0 0
  %1613 = vmatpush1.bf16.msra.mxu0 0
  %1614 = vmatprep.subr.bf16.mxu0 0
  %1615 = vmatpush1.bf16.msra.mxu0 0
  %1616 = vmatprep.subr.bf16.mxu0 0
  %1617 = vmatpush1.bf16.msra.mxu0 0
  %1618 = vmatprep.subr.bf16.mxu0 0
  %1619 = vmatpush1.bf16.msra.mxu0 0
  %1620 = vmatprep.mubr.bf16.mxu0 %v1459
  %1621 = vmatmul.mubr.bf16.gmra.mrb[0].mxu0 %v1374
  %v1622 = vpop.f32.mrb[0].mxu0
  %v1623 = vadd.f32 0.0, %v1622
  %v1624 = vpop.f32.mrb[0].mxu0
  %v1625 = vpop.f32.mrb[0].mxu0
  %v1626 = vadd.f32 0.0, %v1625
  %v1627 = vpop.f32.mrb[0].mxu0
  %1628 = vmatprep.mubr.bf16.mxu0 %v1462
  %1629 = vmatmul.mubr.bf16.gmra.mrb[0].mxu0 %v1384
  %v1630 = vpop.f32.mrb[0].mxu0
  %v1631 = vadd.f32 0.0, %v1630
  %v1632 = vpop.f32.mrb[0].mxu0
  %v1633 = vpop.f32.mrb[0].mxu0
  %v1634 = vadd.f32 0.0, %v1633
  %v1635 = vpop.f32.mrb[0].mxu0
  %1636 = vdwg.mxu0
  %v1637 = vadd.f32 %v1623, %v1631
  %v1638 = vadd.f32 %v1626, %v1634
  %v1639 = vrot.slane %v1637, 1
  %v1640 = vrot.slane %v1638, 1
  %vm1641 = vcmp.lt.s32.totalorder %v34, 7
  %v1642 = vsel %vm1641, %v1639, %v1640
  %v1643 = vsel %vm1641, %v1640, %v1639
  %v1644 = vadd.f32 %v1513, %v1642
  %v1645 = vadd.f32 %v1514, %v1643
  %s1646 = scalar_lea.vmem %s2, 144
  %v1647 = vld [vmem:[%s1646] sm:$0xf]
  %v1648 = vld [vmem:[%s1646 + $0x4] sm:$0xf]
  %v1649 = vld [vmem:[%s1646 + $0x8] sm:$0xf]
  %v1650 = vld [vmem:[%s1646 + $0xc] sm:$0xf]
  %v1651 = vld [vmem:[%s1646 + $0x10] sm:$0xf]
  %v1652 = vld [vmem:[%s1646 + $0x14] sm:$0xf]
  %v1653 = vld [vmem:[%s1646 + $0x18] sm:$0xf]
  %v1654 = vld [vmem:[%s1646 + $0x1c] sm:$0xf]
  %v1655 = vld [vmem:[%s1646 + $0x20] sm:$0xf]
  %v1656 = vld [vmem:[%s1646 + $0x24] sm:$0xf]
  %v1657 = vld [vmem:[%s1646 + $0x28] sm:$0xf]
  %v1658 = vld [vmem:[%s1646 + $0x2c] sm:$0xf]
  %v1659 = vld [vmem:[%s1646 + $0x30] sm:$0xf]
  %v1660 = vld [vmem:[%s1646 + $0x34] sm:$0xf]
  %v1661 = vld [vmem:[%s1646 + $0x38] sm:$0xf]
  %v1662 = vld [vmem:[%s1646 + $0x3c] sm:$0xf]
  %v1663 = vld [vmem:[%s1646 + $0x40] sm:$0xf]
  %v1664 = vld [vmem:[%s1646 + $0x44] sm:$0xf]
  %v1683 = vunpack.c.l.b16 %v1647
  %v1684 = vunpack.c.l.b16 %v1648
  %v1685 = vunpack.c.l.b16 %v1649
  %v1686 = vunpack.c.l.b16 %v1650
  %v1687 = vunpack.c.l.b16 %v1651
  %v1688 = vunpack.c.l.b16 %v1652
  %v1689 = vunpack.c.l.b16 %v1653
  %v1690 = vunpack.c.l.b16 %v1654
  %v1691 = vunpack.c.l.b16 %v1655
  %v1692 = vunpack.c.l.b16 %v1656
  %v1693 = vunpack.c.l.b16 %v1657
  %v1694 = vunpack.c.l.b16 %v1658
  %v1695 = vunpack.c.l.b16 %v1659
  %v1696 = vunpack.c.l.b16 %v1660
  %v1697 = vunpack.c.l.b16 %v1661
  %v1698 = vunpack.c.l.b16 %v1662
  %v1699 = vunpack.c.l.b16 %v1663
  %v1700 = vunpack.c.l.b16 %v1664
  %v1701 = vpack.c.b16 %v1684, %v1683
  %v1702 = vpack.c.b16 %v1686, %v1685
  %v1703 = vpack.c.b16 %v1688, %v1687
  %v1704 = vpack.c.b16 %v1690, %v1689
  %v1705 = vpack.c.b16 %v1692, %v1691
  %v1706 = vpack.c.b16 %v1694, %v1693
  %v1707 = vpack.c.b16 %v1696, %v1695
  %v1708 = vpack.c.b16 %v1698, %v1697
  %v1709 = vpack.c.b16 %v1700, %v1699
  %1719 = vmatprep.subr.bf16.mxu0 0
  %1720 = vmatpush1.bf16.msra.mxu0 %v1701
  %1721 = vmatprep.subr.bf16.mxu0 0
  %1722 = vmatpush1.bf16.msra.mxu0 %v1702
  %1723 = vmatprep.subr.bf16.mxu0 0
  %1724 = vmatpush1.bf16.msra.mxu0 %v1703
  %1725 = vmatprep.subr.bf16.mxu0 0
  %1726 = vmatpush1.bf16.msra.mxu0 %v1704
  %1727 = vmatprep.subr.bf16.mxu0 0
  %1728 = vmatpush1.bf16.msra.mxu0 %v1705
  %1729 = vmatprep.subr.bf16.mxu0 0
  %1730 = vmatpush1.bf16.msra.mxu0 %v1706
  %1731 = vmatprep.subr.bf16.mxu0 0
  %1732 = vmatpush1.bf16.msra.mxu0 %v1707
  %1733 = vmatprep.subr.bf16.mxu0 0
  %1734 = vmatpush1.bf16.msra.mxu0 %v1708
  %1735 = vmatprep.subr.bf16.mxu0 0
  %1736 = vmatpush1.bf16.msra.mxu0 %v1709
  %1737 = vmatprep.subr.bf16.mxu0 0
  %1738 = vmatpush1.bf16.msra.mxu0 0
  %1739 = vmatprep.subr.bf16.mxu0 0
  %1740 = vmatpush1.bf16.msra.mxu0 0
  %1741 = vmatprep.subr.bf16.mxu0 0
  %1742 = vmatpush1.bf16.msra.mxu0 0
  %1743 = vmatprep.subr.bf16.mxu0 0
  %1744 = vmatpush1.bf16.msra.mxu0 0
  %1745 = vmatprep.subr.bf16.mxu0 0
  %1746 = vmatpush1.bf16.msra.mxu0 0
  %1747 = vmatprep.subr.bf16.mxu0 0
  %1748 = vmatpush1.bf16.msra.mxu0 0
  %1749 = vmatprep.subr.bf16.mxu0 0
  %1750 = vmatpush1.bf16.msra.mxu0 0
  %1751 = vmatprep.mubr.bf16.mxu0 %v1459
  %1752 = vmatmul.mubr.bf16.gmra.mrb[0].mxu0 %v1374
  %v1753 = vpop.f32.mrb[0].mxu0
  %v1754 = vadd.f32 0.0, %v1753
  %v1755 = vpop.f32.mrb[0].mxu0
  %v1756 = vpop.f32.mrb[0].mxu0
  %v1757 = vadd.f32 0.0, %v1756
  %v1758 = vpop.f32.mrb[0].mxu0
  %1759 = vmatprep.mubr.bf16.mxu0 %v1462
  %1760 = vmatmul.mubr.bf16.gmra.mrb[0].mxu0 %v1384
  %v1761 = vpop.f32.mrb[0].mxu0
  %v1762 = vadd.f32 0.0, %v1761
  %v1763 = vpop.f32.mrb[0].mxu0
  %v1764 = vpop.f32.mrb[0].mxu0
  %v1765 = vadd.f32 0.0, %v1764
  %v1766 = vpop.f32.mrb[0].mxu0
  %1767 = vdwg.mxu0
  %v1768 = vadd.f32 %v1754, %v1762
  %v1769 = vadd.f32 %v1757, %v1765
  %v1770 = vrot.slane %v1768, 2
  %v1771 = vrot.slane %v1769, 2
  %vm1772 = vcmp.lt.s32.totalorder %v34, 6
  %v1773 = vsel %vm1772, %v1770, %v1771
  %v1774 = vsel %vm1772, %v1771, %v1770
  %v1775 = vadd.f32 %v1644, %v1773
  %v1776 = vadd.f32 %v1645, %v1774
  %v1777 = vld [vmem:[%s8 + $0x2] sm:$0x1]
  %v1778 = vld [vmem:[%s8 + $0x3] sm:$0x1]
  %v1779 = vmul.f32 %v1775, %v70
  %v1780 = vmul.f32 %v1776, %v71
  %v1781 = vadd.f32 %v1779, %v1780
  %v1782 = vrot.slane %v1781, 4
  %v1783 = vadd.f32 %v1781, %v1782
  %v1784 = vrot.slane %v1783, 2
  %v1785 = vadd.f32 %v1783, %v1784
  %v1786 = vrot.slane %v1785, 1
  %v1787 = vadd.f32 %v1785, %v1786
  %v1788 = vmul.f32 %v1779, %v1779
  %v1789 = vmul.f32 %v1780, %v1780
  %v1790 = vadd.f32 %v1788, %v1789
  %v1791 = vrot.slane %v1790, 4
  %v1792 = vadd.f32 %v1790, %v1791
  %v1793 = vrot.slane %v1792, 2
  %v1794 = vadd.f32 %v1792, %v1793
  %v1795 = vrot.slane %v1794, 1
  %v1796 = vadd.f32 %v1794, %v1795
  %v1797 = vsel %vm1025, %v1787, %v1796
  %v1798 = vld [vmem:[%s6] sm:$0xf]
  %v1799 = vld [vmem:[%s6 + $0x4] sm:$0xf]
  %v1800 = vld [vmem:[%s6 + $0x8] sm:$0xf]
  %v1801 = vld [vmem:[%s6 + $0xc] sm:$0xf]
  %v1802 = vld [vmem:[%s6 + $0x10] sm:$0xf]
  %v1803 = vld [vmem:[%s6 + $0x14] sm:$0xf]
  %v1804 = vld [vmem:[%s6 + $0x18] sm:$0xf]
  %v1805 = vld [vmem:[%s6 + $0x1c] sm:$0xf]
  %v1806 = vld [vmem:[%s6 + $0x20] sm:$0xf]
  %v1807 = vld [vmem:[%s6 + $0x24] sm:$0xf]
  %v1808 = vld [vmem:[%s6 + $0x28] sm:$0xf]
  %v1809 = vld [vmem:[%s6 + $0x2c] sm:$0xf]
  %v1810 = vld [vmem:[%s6 + $0x30] sm:$0xf]
  %v1811 = vld [vmem:[%s6 + $0x34] sm:$0xf]
  %v1812 = vld [vmem:[%s6 + $0x38] sm:$0xf]
  %v1813 = vld [vmem:[%s6 + $0x3c] sm:$0xf]
  %v1814 = vpack.c.bf16 %v1797, %v1797
  %v1815 = vunpack.c.l.bf16 %v1814
  %v1816 = vsub.f32 %v1797, %v1815
  %v1817 = vpack.c.bf16 %v1816, %v1816
  %v1819 = vrot.slane %v1817, 7
  %v1822 = vsel %vm1025, %v1814, %v1819
  %v1840 = vunpack.c.l.b16 %v1798
  %v1841 = vunpack.c.l.b16 %v1799
  %v1842 = vunpack.c.l.b16 %v1800
  %v1843 = vunpack.c.l.b16 %v1801
  %v1844 = vunpack.c.l.b16 %v1802
  %v1845 = vunpack.c.l.b16 %v1803
  %v1846 = vunpack.c.l.b16 %v1804
  %v1847 = vunpack.c.l.b16 %v1805
  %v1848 = vunpack.c.l.b16 %v1806
  %v1849 = vunpack.c.l.b16 %v1807
  %v1850 = vunpack.c.l.b16 %v1808
  %v1851 = vunpack.c.l.b16 %v1809
  %v1852 = vunpack.c.l.b16 %v1810
  %v1853 = vunpack.c.l.b16 %v1811
  %v1854 = vunpack.c.l.b16 %v1812
  %v1855 = vunpack.c.l.b16 %v1813
  %v1856 = vpack.c.b16 %v1841, %v1840
  %v1857 = vpack.c.b16 %v1843, %v1842
  %v1858 = vpack.c.b16 %v1845, %v1844
  %v1859 = vpack.c.b16 %v1847, %v1846
  %v1860 = vpack.c.b16 %v1849, %v1848
  %v1861 = vpack.c.b16 %v1851, %v1850
  %v1862 = vpack.c.b16 %v1853, %v1852
  %v1863 = vpack.c.b16 %v1855, %v1854
  %1872 = vmatprep.subr.bf16.mxu0 0
  %1873 = vmatpush1.bf16.msra.mxu0 %v1856
  %1874 = vmatprep.subr.bf16.mxu0 0
  %1875 = vmatpush1.bf16.msra.mxu0 %v1857
  %1876 = vmatprep.subr.bf16.mxu0 0
  %1877 = vmatpush1.bf16.msra.mxu0 %v1858
  %1878 = vmatprep.subr.bf16.mxu0 0
  %1879 = vmatpush1.bf16.msra.mxu0 %v1859
  %1880 = vmatprep.subr.bf16.mxu0 0
  %1881 = vmatpush1.bf16.msra.mxu0 %v1860
  %1882 = vmatprep.subr.bf16.mxu0 0
  %1883 = vmatpush1.bf16.msra.mxu0 %v1861
  %1884 = vmatprep.subr.bf16.mxu0 0
  %1885 = vmatpush1.bf16.msra.mxu0 %v1862
  %1886 = vmatprep.subr.bf16.mxu0 0
  %1887 = vmatpush1.bf16.msra.mxu0 %v1863
  %1888 = vmatprep.subr.bf16.mxu0 0
  %1889 = vmatpush1.bf16.msra.mxu0 0
  %1890 = vmatprep.subr.bf16.mxu0 0
  %1891 = vmatpush1.bf16.msra.mxu0 0
  %1892 = vmatprep.subr.bf16.mxu0 0
  %1893 = vmatpush1.bf16.msra.mxu0 0
  %1894 = vmatprep.subr.bf16.mxu0 0
  %1895 = vmatpush1.bf16.msra.mxu0 0
  %1896 = vmatprep.subr.bf16.mxu0 0
  %1897 = vmatpush1.bf16.msra.mxu0 0
  %1898 = vmatprep.subr.bf16.mxu0 0
  %1899 = vmatpush1.bf16.msra.mxu0 0
  %1900 = vmatprep.subr.bf16.mxu0 0
  %1901 = vmatpush1.bf16.msra.mxu0 0
  %1902 = vmatprep.subr.bf16.mxu0 0
  %1903 = vmatpush1.bf16.msra.mxu0 0
  %1904 = vmatprep.mubr.bf16.mxu0 0
  %1905 = vmatmul.mubr.bf16.gmra.mrb[0].mxu0 %v1822
  %v1906 = vpop.f32.mrb[0].mxu0
  %v1907 = vadd.f32 0.0, %v1906
  %v1908 = vpop.f32.mrb[0].mxu0
  %v1909 = vpop.f32.mrb[0].mxu0
  %v1910 = vpop.f32.mrb[0].mxu0
  %1911 = vdwg.mxu0
  %v1913 = vrot.slane %v1907, 2
  %v1915 = vadd.f32 %v1907, %v1913
  %v1916 = vmul.f32 %v1915, 0.0078125
  %v1917 = vmul.f32 %v1916, %v1916
  %v1919 = vrot.slane %v1917, 7
  %v1921 = vsub.f32 %v1916, %v1919
  %v1922 = vadd.f32 %v1921, 1e-05
  %v1923 = vrsqrt.pop %v1922
  %v1925 = vrot.slane %v1923, 1
  %v1927 = vmul.f32 %v1777, %v1925
  %v1928 = vmul.f32 %v1916, %v1927
  %v1929 = vsub.f32 %v1778, %v1928
  %v1931 = vrot.slane %v1929, 7
  %v1933 = vsel %vm1025, %v1927, %v1931
  %v1934 = vld [vmem:[%s7] sm:$0xf]
  %v1935 = vld [vmem:[%s7 + $0x4] sm:$0xf]
  %v1936 = vld [vmem:[%s7 + $0x8] sm:$0xf]
  %v1937 = vld [vmem:[%s7 + $0xc] sm:$0xf]
  %v1938 = vld [vmem:[%s7 + $0x10] sm:$0xf]
  %v1939 = vld [vmem:[%s7 + $0x14] sm:$0xf]
  %v1940 = vld [vmem:[%s7 + $0x18] sm:$0xf]
  %v1941 = vld [vmem:[%s7 + $0x1c] sm:$0xf]
  %v1942 = vld [vmem:[%s7 + $0x20] sm:$0xf]
  %v1943 = vld [vmem:[%s7 + $0x24] sm:$0xf]
  %v1944 = vld [vmem:[%s7 + $0x28] sm:$0xf]
  %v1945 = vld [vmem:[%s7 + $0x2c] sm:$0xf]
  %v1946 = vld [vmem:[%s7 + $0x30] sm:$0xf]
  %v1947 = vld [vmem:[%s7 + $0x34] sm:$0xf]
  %v1948 = vld [vmem:[%s7 + $0x38] sm:$0xf]
  %v1949 = vld [vmem:[%s7 + $0x3c] sm:$0xf]
  %v1950 = vpack.c.bf16 %v1933, %v1933
  %v1951 = vunpack.c.l.bf16 %v1950
  %v1952 = vsub.f32 %v1933, %v1951
  %v1953 = vpack.c.bf16 %v1952, %v1952
  %v1955 = vrot.slane %v1953, 7
  %v1958 = vsel %vm1025, %v1950, %v1955
  %v1976 = vunpack.c.l.b16 %v1934
  %v1977 = vunpack.c.l.b16 %v1935
  %v1978 = vunpack.c.l.b16 %v1936
  %v1979 = vunpack.c.l.b16 %v1937
  %v1980 = vunpack.c.l.b16 %v1938
  %v1981 = vunpack.c.l.b16 %v1939
  %v1982 = vunpack.c.l.b16 %v1940
  %v1983 = vunpack.c.l.b16 %v1941
  %v1984 = vunpack.c.l.b16 %v1942
  %v1985 = vunpack.c.l.b16 %v1943
  %v1986 = vunpack.c.l.b16 %v1944
  %v1987 = vunpack.c.l.b16 %v1945
  %v1988 = vunpack.c.l.b16 %v1946
  %v1989 = vunpack.c.l.b16 %v1947
  %v1990 = vunpack.c.l.b16 %v1948
  %v1991 = vunpack.c.l.b16 %v1949
  %v1992 = vpack.c.b16 %v1977, %v1976
  %v1993 = vpack.c.b16 %v1979, %v1978
  %v1994 = vpack.c.b16 %v1981, %v1980
  %v1995 = vpack.c.b16 %v1983, %v1982
  %v1996 = vpack.c.b16 %v1985, %v1984
  %v1997 = vpack.c.b16 %v1987, %v1986
  %v1998 = vpack.c.b16 %v1989, %v1988
  %v1999 = vpack.c.b16 %v1991, %v1990
  %2008 = vmatprep.subr.bf16.mxu0 0
  %2009 = vmatpush1.bf16.msra.mxu0 %v1992
  %2010 = vmatprep.subr.bf16.mxu0 0
  %2011 = vmatpush1.bf16.msra.mxu0 %v1993
  %2012 = vmatprep.subr.bf16.mxu0 0
  %2013 = vmatpush1.bf16.msra.mxu0 %v1994
  %2014 = vmatprep.subr.bf16.mxu0 0
  %2015 = vmatpush1.bf16.msra.mxu0 %v1995
  %2016 = vmatprep.subr.bf16.mxu0 0
  %2017 = vmatpush1.bf16.msra.mxu0 %v1996
  %2018 = vmatprep.subr.bf16.mxu0 0
  %2019 = vmatpush1.bf16.msra.mxu0 %v1997
  %2020 = vmatprep.subr.bf16.mxu0 0
  %2021 = vmatpush1.bf16.msra.mxu0 %v1998
  %2022 = vmatprep.subr.bf16.mxu0 0
  %2023 = vmatpush1.bf16.msra.mxu0 %v1999
  %2024 = vmatprep.subr.bf16.mxu0 0
  %2025 = vmatpush1.bf16.msra.mxu0 0
  %2026 = vmatprep.subr.bf16.mxu0 0
  %2027 = vmatpush1.bf16.msra.mxu0 0
  %2028 = vmatprep.subr.bf16.mxu0 0
  %2029 = vmatpush1.bf16.msra.mxu0 0
  %2030 = vmatprep.subr.bf16.mxu0 0
  %2031 = vmatpush1.bf16.msra.mxu0 0
  %2032 = vmatprep.subr.bf16.mxu0 0
  %2033 = vmatpush1.bf16.msra.mxu0 0
  %2034 = vmatprep.subr.bf16.mxu0 0
  %2035 = vmatpush1.bf16.msra.mxu0 0
  %2036 = vmatprep.subr.bf16.mxu0 0
  %2037 = vmatpush1.bf16.msra.mxu0 0
  %2038 = vmatprep.subr.bf16.mxu0 0
  %2039 = vmatpush1.bf16.msra.mxu0 0
  %2040 = vmatprep.mubr.bf16.mxu0 0
  %2041 = vmatmul.mubr.bf16.gmra.mrb[0].mxu0 %v1958
  %v2042 = vpop.f32.mrb[0].mxu0
  %v2043 = vadd.f32 0.0, %v2042
  %v2044 = vpop.f32.mrb[0].mxu0
  %v2045 = vpop.f32.mrb[0].mxu0
  %v2046 = vpop.f32.mrb[0].mxu0
  %2047 = vdwg.mxu0
  %v2049 = vrot.slane %v2043, 2
  %v2051 = vadd.f32 %v2043, %v2049
  %v2052 = vlaneseq
  %v2053 = vshrl.u32 %v2052, 7
  %v2054 = vsub.s32 0, %v2053
  %v2055 = vrot.slane %v2051, %v2054
  %v2056 = vmul.f32 %v1775, %v2055
  %v2057 = vmul.f32 %v1776, %v2055
  %v2058 = vlaneseq
  %v2059 = vshrl.u32 %v2058, 7
  %v2060 = vsub.s32 1, %v2059
  %v2061 = vrot.slane %v2051, %v2060
  %v2062 = vadd.f32 %v2056, %v2061
  %v2063 = vadd.f32 %v2057, %v2061
  %v2064 = vadd.f32 %v2062, %v976
  %v2065 = vadd.f32 %v2063, %v979
  %vm2066 = vcmp.ge.f32.partialorder %v2064, 0.0
  %vm2067 = vcmp.ge.f32.partialorder %v2065, 0.0
  %v2068 = vmul.f32 %v2064, 0.01
  %v2069 = vmul.f32 %v2065, 0.01
  %v2070 = vsel %vm2066, %v2064, %v2068
  %v2071 = vsel %vm2067, %v2065, %v2069
  %2072 = vst [vmem:[%s9] sm:$0xff] %v2070
  %2073 = vst [vmem:[%s9 + $0x8] sm:$0xff] %v2071
  // Predicated region
  $region38: #{resblock_forward.1} parent=0 // pred_check
    _
  $region39: #{resblock_forward.1} parent=0 // pred_check_branch
    %2075 = sbr.rel (0) target = $region41
  $region40: #{resblock_forward.1} parent=0 // pred_region
    _
  $region41: #{resblock_forward.1} parent=0 // pred_fallthru
    _
  // Predicated region
  $region42: #{resblock_forward.1} parent=0 // pred_check
    _
  $region43: #{resblock_forward.1} parent=0 // pred_check_branch
    %2077 = sbr.rel (0) target = $region45
  $region44: #{resblock_forward.1} parent=0 // pred_region
    _
  $region45: #{resblock_forward.1} parent=0 // pred_fallthru
    _

</llo_original>
